<compile_context>
chip_gen: v7x
topology: tpu7x:2x2x1
jax: 0.10.0
libtpu: 0.0.40
codegen_flags: <defaults>
</compile_context>

<pallas_src>
import numpy as np
import jax
import jax.numpy as jnp
from jax import lax
from jax.experimental import pallas as pl
from jax.experimental.pallas import tpu as pltpu

HISTORY_TIMES = np.array([4, 8, 16, 32, 48, 64, 96, 128])
INDICES_NP = HISTORY_TIMES - 1                 # [3, 7, 15, 31, 47, 63, 95, 127]

NUM_HIDDEN = 100                               # num_hidden_read
TIME_AS_INPUT_SIZE = 6
NUM_OUTPUT = 12
NUM_INPUT = NUM_OUTPUT + TIME_AS_INPUT_SIZE    # 18
NUM_TIMES = len(HISTORY_TIMES)                 # 8
HISTORY_DEPTH = int(HISTORY_TIMES.max())       # 128
assert HISTORY_DEPTH & (HISTORY_DEPTH - 1) == 0  # ring pointer uses & masking

LANE = 128                                     # TPU lane width
GATES = 4
W_OFF = 64                                     # read_index lives at lanes [64, 72)


# ----------------------------------------------------------------------------
# Fused rollout kernel: one recurrent step per grid point, state in VMEM
# ----------------------------------------------------------------------------
def history_reader_rollout_kernel(x_ref, h0_ref, c0_ref, hist0_ref,
                                  wx_ref, wh_ref, bf_ref, wl_ref, bl_ref,
                                  rw_ref, h_ref, c_ref, hist_ref):
    """One LSTM + softmax-read step; h/c/history are VMEM-resident outputs.

    x_ref    : (B, 128)      f32  x_t, features at lanes [0,18), rest zero
    h0/c0    : (B, 128)      f32  initial hidden state (lanes >= 100 zero)
    hist0    : (128, B, 128) f32  initial history, time-major, lanes >= 12 zero
    wx/wh    : (128, 512)    bf16 LSTM weights, gate g at lanes [g*128, g*128+100)
    bf       : (1, 512)      f32  LSTM bias (b_ih + b_hh), same layout
    wl       : (128, 128)    bf16 read_linear weight, outputs at lanes [64,72)
    bl       : (1, 128)      f32  read_linear bias; padded lanes hold -1e30 (mask)
    rw_ref   : (B, 128)      f32  per-step out: read lanes [0,12), read_index [64,72)
    h/c_ref  : (B, 128)      f32  resident LSTM state (written back once)
    hist_ref : (128, B, 128) f32  resident history ring buffer (written back once)
    """
    t = pl.program_id(1)

    @pl.when(t == 0)
    def _init():                      # new batch block: load the initial state
        h_ref[...] = h0_ref[...]
        c_ref[...] = c0_ref[...]
        hist_ref[...] = hist0_ref[...]

    x = x_ref[...]                                                 # (B, 128) f32

    # ---- LSTM cell: two K=128 bf16 MXU passes, f32 accumulation ------------
    gates = (jnp.dot(x.astype(jnp.bfloat16), wx_ref[...],
                     preferred_element_type=jnp.float32)
             + jnp.dot(h_ref[...].astype(jnp.bfloat16), wh_ref[...],
                       preferred_element_type=jnp.float32)
             + bf_ref[...])
    sig = lambda z: 0.5 * jnp.tanh(0.5 * z) + 0.5                  # one EUP push
    i_g = sig(gates[:, 0 * LANE:1 * LANE])
    f_g = sig(gates[:, 1 * LANE:2 * LANE])
    g_g = jnp.tanh(gates[:, 2 * LANE:3 * LANE])
    o_g = sig(gates[:, 3 * LANE:4 * LANE])
    c1 = f_g * c_ref[...] + i_g * g_g               # padded lanes stay exactly 0
    h1 = o_g * jnp.tanh(c1)
    h_ref[...] = h1
    c_ref[...] = c1

    # ---- read_linear + masked softmax (no max-subtract: logits bounded) ----
    logits = jnp.dot(h1.astype(jnp.bfloat16), wl_ref[...],
                     preferred_element_type=jnp.float32) + bl_ref[...]
    e = jnp.exp(logits)                             # -1e30 mask lanes -> exactly 0
    # NOTE: approx reciprocal -> read_index sums to 1 only to ~1e-3; use
    # approx=False if downstream treats read_index as exact probabilities.
    w = e * pl.reciprocal(jnp.sum(e, axis=-1, keepdims=True), approx=True)

    # ---- ring-buffer history insert: one masked row, lanes >= 12 kept zero --
    new_ptr = (HISTORY_DEPTH - 1) - (t & (HISTORY_DEPTH - 1))      # == (-(t+1)) % 128
    lane = lax.broadcasted_iota(jnp.int32, x.shape, 1)
    hist_ref[new_ptr] = jnp.where(lane < NUM_OUTPUT, x, 0.0)

    # ---- variants gather + weighted read: independent products, tree add ---
    # TODO(synk): at very large B this could become a bf16 matmul against a
    # constant (128,128) selection matrix + pltpu.roll folds; at B<=140 the
    # full-lane VPU tree below is already off the critical path.
    p = [w[:, W_OFF + k:W_OFF + k + 1]
         * hist_ref[(new_ptr + int(INDICES_NP[k])) & (HISTORY_DEPTH - 1)]
         for k in range(NUM_TIMES)]
    read = ((p[0] + p[1]) + (p[2] + p[3])) + ((p[4] + p[5]) + (p[6] + p[7]))

    # one lane-dense store: read at lanes 0..11, read_index at lanes 64..71
    rw_ref[...] = read + w


# ----------------------------------------------------------------------------
# One-time parameter packing (hoisted out of the rollout entirely)
# ----------------------------------------------------------------------------
def prepare_params(params):
    H, L = NUM_HIDDEN, LANE
    w_ih, w_hh = params["w_ih"], params["w_hh"]      # (4H, 18), (4H, 100)
    b = params["b_ih"] + params["b_hh"]              # (4H,)

    wx = jnp.zeros((L, GATES * L), jnp.float32)      # rows 0..17  = x weights
    wh = jnp.zeros((L, GATES * L), jnp.float32)      # rows 0..99  = h weights
    bf = jnp.zeros((1, GATES * L), jnp.float32)
    for g in range(GATES):                           # PyTorch gate order i,f,g,o
        wx = wx.at[:NUM_INPUT, g * L:g * L + H].set(w_ih[g * H:(g + 1) * H, :].T)
        wh = wh.at[:H, g * L:g * L + H].set(w_hh[g * H:(g + 1) * H, :].T)
        bf = bf.at[0, g * L:g * L + H].set(b[g * H:(g + 1) * H])

    wl = jnp.zeros((L, L), jnp.float32)
    wl = wl.at[:H, W_OFF:W_OFF + NUM_TIMES].set(params["w_lin"].T)
    bl = jnp.full((1, L), -1e30, jnp.float32)        # f32 softmax mask (keep f32!)
    bl = bl.at[0, W_OFF:W_OFF + NUM_TIMES].set(params["b_lin"])

    return {"wx": wx.astype(jnp.bfloat16), "wh": wh.astype(jnp.bfloat16),
            "bf": bf, "wl": wl.astype(jnp.bfloat16), "bl": bl}


# ----------------------------------------------------------------------------
# Wrappers
# ----------------------------------------------------------------------------
def _pad_lanes(a, width=LANE):
    pad = width - a.shape[-1]
    if pad == 0:
        return a
    return jnp.pad(a, ((0, 0),) * (a.ndim - 1) + ((0, pad),))


def history_reader_rollout(xs, hidden, history, prepped, *, batch_block=None):
    """Run the whole T-step rollout in ONE pallas_call.

    xs      : (T, B, 18)   inputs for every step
    hidden  : (h, c), each (1, B, 100)
    history : (B, 128, 12) module-ordered history (index 0 = newest)
    Returns (reads (T,B,12), (h,c) each (1,B,100), new module-ordered history
    (B,128,12), read_index (T,B,8)).
    """
    T, B, _ = xs.shape
    BB = B if batch_block is None else batch_block   # v7x: set BB = B//2 (B padded)
    assert B % BB == 0, "pad the batch to a multiple of batch_block"
    nb = B // BB

    # x stays f32 so history rows written by the kernel are bit-exact; the
    # bf16 cast for the MXU happens in-kernel (one small VPU pass per step).
    x_p = _pad_lanes(xs.astype(jnp.float32))                         # (T, B, 128)
    h0_p = _pad_lanes(hidden[0][0].astype(jnp.float32))              # (B, 128)
    c0_p = _pad_lanes(hidden[1][0].astype(jnp.float32))              # (B, 128)
    # time-major, lane-padded initial history (one-time layout change)
    hist0_p = _pad_lanes(jnp.transpose(history, (1, 0, 2)))          # (128, B, 128)

    rw, h_out, c_out, hist_out = pl.pallas_call(
        history_reader_rollout_kernel,
        out_shape=(
            jax.ShapeDtypeStruct((T, B, LANE), jnp.float32),             # read|ridx
            jax.ShapeDtypeStruct((B, LANE), jnp.float32),                # h final
            jax.ShapeDtypeStruct((B, LANE), jnp.float32),                # c final
            jax.ShapeDtypeStruct((HISTORY_DEPTH, B, LANE), jnp.float32), # ring buf
        ),
        grid_spec=pltpu.PrefetchScalarGridSpec(
            num_scalar_prefetch=0,
            grid=(nb, T),
            in_specs=[
                pl.BlockSpec((None, BB, LANE), lambda b, t: (t, b, 0)),           # x_t
                pl.BlockSpec((BB, LANE), lambda b, t: (b, 0)),                    # h0
                pl.BlockSpec((BB, LANE), lambda b, t: (b, 0)),                    # c0
                pl.BlockSpec((HISTORY_DEPTH, BB, LANE), lambda b, t: (0, b, 0)),  # hist0
                pl.BlockSpec((LANE, GATES * LANE), lambda b, t: (0, 0)),          # wx
                pl.BlockSpec((LANE, GATES * LANE), lambda b, t: (0, 0)),          # wh
                pl.BlockSpec((1, GATES * LANE), lambda b, t: (0, 0)),             # bf
                pl.BlockSpec((LANE, LANE), lambda b, t: (0, 0)),                  # wl
                pl.BlockSpec((1, LANE), lambda b, t: (0, 0)),                     # bl
            ],
            out_specs=(
                pl.BlockSpec((None, BB, LANE), lambda b, t: (t, b, 0)),           # per-step
                pl.BlockSpec((BB, LANE), lambda b, t: (b, 0)),                    # resident
                pl.BlockSpec((BB, LANE), lambda b, t: (b, 0)),                    # resident
                pl.BlockSpec((HISTORY_DEPTH, BB, LANE), lambda b, t: (0, b, 0)),  # resident
            ),
        ),
        compiler_params=pltpu.CompilerParams(
            # batch axis feeds both v7x TensorCores when batch_block < B;
            # time axis is the sequential recurrence (VMEM-resident state).
            dimension_semantics=("parallel", "arbitrary"),
        ),
        # NOTE: at production B (~140) the lane-padded history blocks use a few
        # MiB of VMEM each; still well within every generation's default limit.
    )(x_p, h0_p, c0_p, hist0_p, prepped["wx"], prepped["wh"], prepped["bf"],
      prepped["wl"], prepped["bl"])

    reads = rw[:, :, :NUM_OUTPUT]
    read_index = rw[:, :, W_OFF:W_OFF + NUM_TIMES]
    h1 = h_out[:, :NUM_HIDDEN]
    c1 = c_out[:, :NUM_HIDDEN]
    # one-time un-rolling of the ring buffer back to module order
    ptr = (-T) % HISTORY_DEPTH
    order = (ptr + jnp.arange(HISTORY_DEPTH)) % HISTORY_DEPTH
    new_history = jnp.transpose(hist_out[order][:, :, :NUM_OUTPUT], (1, 0, 2))
    return reads, (h1[None], c1[None]), new_history, read_index


def history_reader_forward(x, hidden, history, prepped):
    """Module-faithful single forward() step (T == 1 rollout).

    x: (1, B, 18).  Returns (read (1,B,12), new hidden, new history,
    read_index (1,B,8)).  The torch module's `self.read_index = ...numpy()`
    host-side side effect is returned as the explicit read_index output."""
    return history_reader_rollout(x, hidden, history, prepped)


def init_hidden(batch_size):
    z = jnp.zeros((1, batch_size, NUM_HIDDEN), jnp.float32)
    return (z, z)


# ----------------------------------------------------------------------------
# Pure-JAX reference (PyTorch semantics) and init
# ----------------------------------------------------------------------------
def history_reader_ref_step(x, hidden, history, params):
    h0, c0 = hidden
    x0 = x[0]
    gates = (x0 @ params["w_ih"].T + h0[0] @ params["w_hh"].T
             + params["b_ih"] + params["b_hh"])
    H = NUM_HIDDEN
    i_g = jax.nn.sigmoid(gates[:, 0 * H:1 * H])
    f_g = jax.nn.sigmoid(gates[:, 1 * H:2 * H])
    g_g = jnp.tanh(gates[:, 2 * H:3 * H])
    o_g = jax.nn.sigmoid(gates[:, 3 * H:4 * H])
    c1 = f_g * c0[0] + i_g * g_g
    h1 = o_g * jnp.tanh(c1)
    logits = h1 @ params["w_lin"].T + params["b_lin"]
    w = jax.nn.softmax(logits, axis=-1)
    new_history = jnp.concatenate([x0[:, None, :NUM_OUTPUT], history[:, :-1]], axis=1)
    variants = new_history[:, INDICES_NP, :]
    read = jnp.einsum("bk,bkd->bd", w, variants)
    return read[None], (h1[None], c1[None]), new_history, w[None]


def init_params(key):
    """PyTorch-style LSTM/Linear init: U(-1/sqrt(H), 1/sqrt(H))."""
    ks = jax.random.split(key, 6)
    s = 1.0 / np.sqrt(NUM_HIDDEN)
    u = lambda k, shape: jax.random.uniform(k, shape, jnp.float32, -s, s)
    return {
        "w_ih": u(ks[0], (4 * NUM_HIDDEN, NUM_INPUT)),
        "w_hh": u(ks[1], (4 * NUM_HIDDEN, NUM_HIDDEN)),
        "b_ih": u(ks[2], (4 * NUM_HIDDEN,)),
        "b_hh": u(ks[3], (4 * NUM_HIDDEN,)),
        "w_lin": u(ks[4], (NUM_TIMES, NUM_HIDDEN)),
        "b_lin": u(ks[5], (NUM_TIMES,)),
    }


# ----------------------------------------------------------------------------
if __name__ == "__main__":
    key = jax.random.PRNGKey(0)
    k_p, k_x, k_h = jax.random.split(key, 3)

    B = 8          # small demo batch (module default is 140)
    T = 6          # rollout length exercising the recurrence + ring buffer

    params = init_params(k_p)
    prepped = prepare_params(params)          # one-time packing

    xs = jax.random.normal(k_x, (T, B, NUM_INPUT), jnp.float32)
    history0 = jax.random.normal(k_h, (B, HISTORY_DEPTH, NUM_OUTPUT), jnp.float32)
    hidden0 = init_hidden(B)

    # fused-rollout Pallas kernel: ONE pallas_call for all T steps
    reads, hid, hist, ridx = history_reader_rollout(xs, hidden0, history0, prepped)
    reads = jax.block_until_ready(reads)

    # pure-JAX (PyTorch-semantics) reference, stepped
    hid_r, hist_r = hidden0, history0
    reads_r, ridx_r = [], []
    for t in range(T):
        r, hid_r, hist_r, w = history_reader_ref_step(xs[t][None], hid_r, hist_r, params)
        reads_r.append(r[0])
        ridx_r.append(w[0])
    reads_r = jnp.stack(reads_r)
    ridx_r = jnp.stack(ridx_r)

    # bf16 MXU + approx reciprocal -> slightly relaxed tolerance vs f32 ref
    np.testing.assert_allclose(np.asarray(reads), np.asarray(reads_r),
                               rtol=2e-2, atol=2e-2)
    np.testing.assert_allclose(np.asarray(ridx), np.asarray(ridx_r),
                               rtol=2e-2, atol=2e-2)
    np.testing.assert_allclose(np.asarray(hid[0]), np.asarray(hid_r[0]),
                               rtol=3e-2, atol=3e-2)
    np.testing.assert_allclose(np.asarray(hid[1]), np.asarray(hid_r[1]),
                               rtol=3e-2, atol=3e-2)
    # history rows are stored / copied bit-exactly through the ring buffer
    np.testing.assert_array_equal(np.asarray(hist), np.asarray(hist_r))

    assert reads.shape == (T, B, NUM_OUTPUT)
    assert ridx.shape == (T, B, NUM_TIMES)
    print("KERNEL_OK")
</pallas_src>

<mosaic_0001>
module attributes {stable_mosaic.version = 11 : i64} {
  func.func @history_reader_rollout_kernel(%arg0: i32, %arg1: i32, %arg2: memref<1x8x128xf32, #tpu.memory_space<vmem>>, %arg3: memref<8x128xf32, #tpu.memory_space<vmem>>, %arg4: memref<8x128xf32, #tpu.memory_space<vmem>>, %arg5: memref<128x8x128xf32, #tpu.memory_space<vmem>>, %arg6: memref<128x512xbf16, #tpu.memory_space<vmem>>, %arg7: memref<128x512xbf16, #tpu.memory_space<vmem>>, %arg8: memref<1x512xf32, #tpu.memory_space<vmem>>, %arg9: memref<128x128xbf16, #tpu.memory_space<vmem>>, %arg10: memref<1x128xf32, #tpu.memory_space<vmem>>, %arg11: memref<1x8x128xf32, #tpu.memory_space<vmem>>, %arg12: memref<8x128xf32, #tpu.memory_space<vmem>>, %arg13: memref<8x128xf32, #tpu.memory_space<vmem>>, %arg14: memref<128x8x128xf32, #tpu.memory_space<vmem>>) attributes {dimension_semantics = [#tpu.dimension_semantics<parallel>, #tpu.dimension_semantics<arbitrary>], iteration_bounds = array<i64: 1, 6>, scalar_prefetch = 0 : i64, scratch_operands = 0 : i64, tpu.core_type = #tpu.core_type<tc>, window_params = [{transform_indices = @transform_0, window_bounds = array<i64: 1, 8, 128>}, {transform_indices = @transform_1, window_bounds = array<i64: 8, 128>}, {transform_indices = @transform_2, window_bounds = array<i64: 8, 128>}, {transform_indices = @transform_3, window_bounds = array<i64: 128, 8, 128>}, {pipeline_mode = #tpu.pipeline_mode<synchronous>, transform_indices = @transform_4, window_bounds = array<i64: 128, 512>}, {pipeline_mode = #tpu.pipeline_mode<synchronous>, transform_indices = @transform_5, window_bounds = array<i64: 128, 512>}, {pipeline_mode = #tpu.pipeline_mode<synchronous>, transform_indices = @transform_6, window_bounds = array<i64: 1, 512>}, {pipeline_mode = #tpu.pipeline_mode<synchronous>, transform_indices = @transform_7, window_bounds = array<i64: 128, 128>}, {pipeline_mode = #tpu.pipeline_mode<synchronous>, transform_indices = @transform_8, window_bounds = array<i64: 1, 128>}, {transform_indices = @transform_9, window_bounds = array<i64: 1, 8, 128>}, {transform_indices = @transform_10, window_bounds = array<i64: 8, 128>}, {transform_indices = @transform_11, window_bounds = array<i64: 8, 128>}, {transform_indices = @transform_12, window_bounds = array<i64: 128, 8, 128>}]} {
    %c0_i32 = arith.constant 0 : i32
    %0 = arith.cmpi eq, %arg1, %c0_i32 : i32
    %1 = arith.extui %0 : i1 to i32
    %c0_i32_0 = arith.constant 0 : i32
    %2 = arith.cmpi ne, %1, %c0_i32_0 : i32
    scf.if %2 {
      %c0_65 = arith.constant 0 : index
      %c0_66 = arith.constant 0 : index
      %148 = vector.load %arg3[%c0_65, %c0_66] : memref<8x128xf32, #tpu.memory_space<vmem>>, vector<8x128xf32>
      %c0_67 = arith.constant 0 : index
      %c0_68 = arith.constant 0 : index
      %149 = vector.load %arg12[%c0_67, %c0_68] : memref<8x128xf32, #tpu.memory_space<vmem>>, vector<8x128xf32>
      tpu.vector_store %arg12[%c0_67, %c0_68], %148 {strides = array<i32>} : memref<8x128xf32, #tpu.memory_space<vmem>>, vector<8x128xf32>,
      %c0_69 = arith.constant 0 : index
      %c0_70 = arith.constant 0 : index
      %150 = vector.load %arg4[%c0_69, %c0_70] : memref<8x128xf32, #tpu.memory_space<vmem>>, vector<8x128xf32>
      %c0_71 = arith.constant 0 : index
      %c0_72 = arith.constant 0 : index
      %151 = vector.load %arg13[%c0_71, %c0_72] : memref<8x128xf32, #tpu.memory_space<vmem>>, vector<8x128xf32>
      tpu.vector_store %arg13[%c0_71, %c0_72], %150 {strides = array<i32>} : memref<8x128xf32, #tpu.memory_space<vmem>>, vector<8x128xf32>,
      %c0_73 = arith.constant 0 : index
      %c0_74 = arith.constant 0 : index
      %c0_75 = arith.constant 0 : index
      %152 = vector.load %arg5[%c0_73, %c0_74, %c0_75] : memref<128x8x128xf32, #tpu.memory_space<vmem>>, vector<128x8x128xf32>
      %c0_76 = arith.constant 0 : index
      %c0_77 = arith.constant 0 : index
      %c0_78 = arith.constant 0 : index
      %153 = vector.load %arg14[%c0_76, %c0_77, %c0_78] : memref<128x8x128xf32, #tpu.memory_space<vmem>>, vector<128x8x128xf32>
      tpu.vector_store %arg14[%c0_76, %c0_77, %c0_78], %152 {strides = array<i32>} : memref<128x8x128xf32, #tpu.memory_space<vmem>>, vector<128x8x128xf32>,
    } else {
    }
    %c0 = arith.constant 0 : index
    %c0_1 = arith.constant 0 : index
    %c0_2 = arith.constant 0 : index
    %3 = vector.load %arg2[%c0, %c0_1, %c0_2] : memref<1x8x128xf32, #tpu.memory_space<vmem>>, vector<1x8x128xf32>
    %4 = vector.shape_cast %3 : vector<1x8x128xf32> to vector<8x128xf32>
    %5 = arith.truncf %4 : vector<8x128xf32> to vector<8x128xbf16>
    %c0_3 = arith.constant 0 : index
    %c0_4 = arith.constant 0 : index
    %6 = vector.load %arg6[%c0_3, %c0_4] : memref<128x512xbf16, #tpu.memory_space<vmem>>, vector<128x512xbf16>
    %cst = arith.constant dense<0.000000e+00> : vector<8x512xf32>
    %7 = tpu.matmul %5, %6, %cst {dimension_numbers = #tpu.dot_dimension_numbers<[1], [0], [0], [1], [0, 0, 1, 1], [], []>} : vector<8x128xbf16>, vector<128x512xbf16>, vector<8x512xf32> -> vector<8x512xf32>
    %c0_5 = arith.constant 0 : index
    %c0_6 = arith.constant 0 : index
    %8 = vector.load %arg12[%c0_5, %c0_6] : memref<8x128xf32, #tpu.memory_space<vmem>>, vector<8x128xf32>
    %9 = arith.truncf %8 : vector<8x128xf32> to vector<8x128xbf16>
    %c0_7 = arith.constant 0 : index
    %c0_8 = arith.constant 0 : index
    %10 = vector.load %arg7[%c0_7, %c0_8] : memref<128x512xbf16, #tpu.memory_space<vmem>>, vector<128x512xbf16>
    %cst_9 = arith.constant dense<0.000000e+00> : vector<8x512xf32>
    %11 = tpu.matmul %9, %10, %cst_9 {dimension_numbers = #tpu.dot_dimension_numbers<[1], [0], [0], [1], [0, 0, 1, 1], [], []>} : vector<8x128xbf16>, vector<128x512xbf16>, vector<8x512xf32> -> vector<8x512xf32>
    %12 = arith.addf %7, %11 : vector<8x512xf32>
    %c0_10 = arith.constant 0 : index
    %c0_11 = arith.constant 0 : index
    %13 = vector.load %arg8[%c0_10, %c0_11] : memref<1x512xf32, #tpu.memory_space<vmem>>, vector<1x512xf32>
    %14 = vector.broadcast %13 : vector<1x512xf32> to vector<8x512xf32>
    %15 = arith.addf %12, %14 : vector<8x512xf32>
    %16 = vector.extract_strided_slice %15 {offsets = [0, 0], sizes = [8, 128], strides = [1, 1]} : vector<8x512xf32> to vector<8x128xf32>
    %cst_12 = arith.constant 5.000000e-01 : f32
    %17 = vector.broadcast %cst_12 : f32 to vector<8x128xf32>
    %18 = arith.mulf %17, %16 : vector<8x128xf32>
    %19 = math.tanh %18 : vector<8x128xf32>
    %cst_13 = arith.constant 5.000000e-01 : f32
    %20 = vector.broadcast %cst_13 : f32 to vector<8x128xf32>
    %21 = arith.mulf %20, %19 : vector<8x128xf32>
    %cst_14 = arith.constant 5.000000e-01 : f32
    %22 = vector.broadcast %cst_14 : f32 to vector<8x128xf32>
    %23 = arith.addf %21, %22 : vector<8x128xf32>
    %24 = vector.extract_strided_slice %15 {offsets = [0, 128], sizes = [8, 128], strides = [1, 1]} : vector<8x512xf32> to vector<8x128xf32>
    %cst_15 = arith.constant 5.000000e-01 : f32
    %25 = vector.broadcast %cst_15 : f32 to vector<8x128xf32>
    %26 = arith.mulf %25, %24 : vector<8x128xf32>
    %27 = math.tanh %26 : vector<8x128xf32>
    %cst_16 = arith.constant 5.000000e-01 : f32
    %28 = vector.broadcast %cst_16 : f32 to vector<8x128xf32>
    %29 = arith.mulf %28, %27 : vector<8x128xf32>
    %cst_17 = arith.constant 5.000000e-01 : f32
    %30 = vector.broadcast %cst_17 : f32 to vector<8x128xf32>
    %31 = arith.addf %29, %30 : vector<8x128xf32>
    %32 = vector.extract_strided_slice %15 {offsets = [0, 256], sizes = [8, 128], strides = [1, 1]} : vector<8x512xf32> to vector<8x128xf32>
    %33 = math.tanh %32 : vector<8x128xf32>
    %34 = vector.extract_strided_slice %15 {offsets = [0, 384], sizes = [8, 128], strides = [1, 1]} : vector<8x512xf32> to vector<8x128xf32>
    %cst_18 = arith.constant 5.000000e-01 : f32
    %35 = vector.broadcast %cst_18 : f32 to vector<8x128xf32>
    %36 = arith.mulf %35, %34 : vector<8x128xf32>
    %37 = math.tanh %36 : vector<8x128xf32>
    %cst_19 = arith.constant 5.000000e-01 : f32
    %38 = vector.broadcast %cst_19 : f32 to vector<8x128xf32>
    %39 = arith.mulf %38, %37 : vector<8x128xf32>
    %cst_20 = arith.constant 5.000000e-01 : f32
    %40 = vector.broadcast %cst_20 : f32 to vector<8x128xf32>
    %41 = arith.addf %39, %40 : vector<8x128xf32>
    %c0_21 = arith.constant 0 : index
    %c0_22 = arith.constant 0 : index
    %42 = vector.load %arg13[%c0_21, %c0_22] : memref<8x128xf32, #tpu.memory_space<vmem>>, vector<8x128xf32>
    %43 = arith.mulf %31, %42 : vector<8x128xf32>
    %44 = arith.mulf %23, %33 : vector<8x128xf32>
    %45 = arith.addf %43, %44 : vector<8x128xf32>
    %46 = math.tanh %45 : vector<8x128xf32>
    %47 = arith.mulf %41, %46 : vector<8x128xf32>
    %c0_23 = arith.constant 0 : index
    %c0_24 = arith.constant 0 : index
    %48 = vector.load %arg12[%c0_23, %c0_24] : memref<8x128xf32, #tpu.memory_space<vmem>>, vector<8x128xf32>
    tpu.vector_store %arg12[%c0_23, %c0_24], %47 {strides = array<i32>} : memref<8x128xf32, #tpu.memory_space<vmem>>, vector<8x128xf32>,
    %c0_25 = arith.constant 0 : index
    %c0_26 = arith.constant 0 : index
    %49 = vector.load %arg13[%c0_25, %c0_26] : memref<8x128xf32, #tpu.memory_space<vmem>>, vector<8x128xf32>
    tpu.vector_store %arg13[%c0_25, %c0_26], %45 {strides = array<i32>} : memref<8x128xf32, #tpu.memory_space<vmem>>, vector<8x128xf32>,
    %50 = arith.truncf %47 : vector<8x128xf32> to vector<8x128xbf16>
    %c0_27 = arith.constant 0 : index
    %c0_28 = arith.constant 0 : index
    %51 = vector.load %arg9[%c0_27, %c0_28] : memref<128x128xbf16, #tpu.memory_space<vmem>>, vector<128x128xbf16>
    %cst_29 = arith.constant dense<0.000000e+00> : vector<8x128xf32>
    %52 = tpu.matmul %50, %51, %cst_29 {dimension_numbers = #tpu.dot_dimension_numbers<[1], [0], [0], [1], [0, 0, 1, 1], [], []>} : vector<8x128xbf16>, vector<128x128xbf16>, vector<8x128xf32> -> vector<8x128xf32>
    %c0_30 = arith.constant 0 : index
    %c0_31 = arith.constant 0 : index
    %53 = vector.load %arg10[%c0_30, %c0_31] : memref<1x128xf32, #tpu.memory_space<vmem>>, vector<1x128xf32>
    %54 = vector.broadcast %53 : vector<1x128xf32> to vector<8x128xf32>
    %55 = arith.addf %52, %54 : vector<8x128xf32>
    %56 = math.exp %55 : vector<8x128xf32>
    %cst_32 = arith.constant dense<0.000000e+00> : vector<8xf32>
    %57 = vector.multi_reduction <add>, %56, %cst_32 [1] : vector<8x128xf32> to vector<8xf32>
    %58 = vector.shape_cast %57 : vector<8xf32> to vector<8x1xf32>
    %59 = tpu.reciprocal %58 {approx = true} : vector<8x1xf32> -> vector<8x1xf32>
    %60 = vector.broadcast %59 : vector<8x1xf32> to vector<8x128xf32>
    %61 = arith.mulf %56, %60 : vector<8x128xf32>
    %c127_i32 = arith.constant 127 : i32
    %62 = arith.andi %arg1, %c127_i32 : i32
    %c127_i32_33 = arith.constant 127 : i32
    %63 = arith.subi %c127_i32_33, %62 : i32
    %64 = tpu.iota {dimensions = array<i32: 1>} : vector<8x128xi32>
    %c12_i32 = arith.constant 12 : i32
    %65 = vector.broadcast %c12_i32 : i32 to vector<8x128xi32>
    %66 = arith.cmpi slt, %64, %65 : vector<8x128xi32>
    %cst_34 = arith.constant 0.000000e+00 : f32
    %67 = vector.broadcast %cst_34 : f32 to vector<8x128xf32>
    %68 = arith.select %66, %4, %67 : vector<8x128xi1>, vector<8x128xf32>
    %69 = arith.index_cast %63 : i32 to index
    %c0_35 = arith.constant 0 : index
    %c0_36 = arith.constant 0 : index
    %70 = vector.load %arg14[%69, %c0_35, %c0_36] : memref<128x8x128xf32, #tpu.memory_space<vmem>>, vector<1x8x128xf32>
    %71 = vector.shape_cast %70 : vector<1x8x128xf32> to vector<8x128xf32>
    %72 = vector.shape_cast %68 : vector<8x128xf32> to vector<1x8x128xf32>
    tpu.vector_store %arg14[%69, %c0_35, %c0_36], %72 {strides = array<i32>} : memref<128x8x128xf32, #tpu.memory_space<vmem>>, vector<1x8x128xf32>,
    %73 = vector.extract_strided_slice %61 {offsets = [0, 64], sizes = [8, 1], strides = [1, 1]} : vector<8x128xf32> to vector<8x1xf32>
    %c3_i32 = arith.constant 3 : i32
    %74 = arith.addi %63, %c3_i32 : i32
    %c127_i32_37 = arith.constant 127 : i32
    %75 = arith.andi %74, %c127_i32_37 : i32
    %76 = arith.index_cast %75 : i32 to index
    %c0_38 = arith.constant 0 : index
    %c0_39 = arith.constant 0 : index
    %77 = vector.load %arg14[%76, %c0_38, %c0_39] : memref<128x8x128xf32, #tpu.memory_space<vmem>>, vector<1x8x128xf32>
    %78 = vector.shape_cast %77 : vector<1x8x128xf32> to vector<8x128xf32>
    %79 = vector.broadcast %73 : vector<8x1xf32> to vector<8x128xf32>
    %80 = arith.mulf %79, %78 : vector<8x128xf32>
    %81 = vector.extract_strided_slice %61 {offsets = [0, 65], sizes = [8, 1], strides = [1, 1]} : vector<8x128xf32> to vector<8x1xf32>
    %c7_i32 = arith.constant 7 : i32
    %82 = arith.addi %63, %c7_i32 : i32
    %c127_i32_40 = arith.constant 127 : i32
    %83 = arith.andi %82, %c127_i32_40 : i32
    %84 = arith.index_cast %83 : i32 to index
    %c0_41 = arith.constant 0 : index
    %c0_42 = arith.constant 0 : index
    %85 = vector.load %arg14[%84, %c0_41, %c0_42] : memref<128x8x128xf32, #tpu.memory_space<vmem>>, vector<1x8x128xf32>
    %86 = vector.shape_cast %85 : vector<1x8x128xf32> to vector<8x128xf32>
    %87 = vector.broadcast %81 : vector<8x1xf32> to vector<8x128xf32>
    %88 = arith.mulf %87, %86 : vector<8x128xf32>
    %89 = vector.extract_strided_slice %61 {offsets = [0, 66], sizes = [8, 1], strides = [1, 1]} : vector<8x128xf32> to vector<8x1xf32>
    %c15_i32 = arith.constant 15 : i32
    %90 = arith.addi %63, %c15_i32 : i32
    %c127_i32_43 = arith.constant 127 : i32
    %91 = arith.andi %90, %c127_i32_43 : i32
    %92 = arith.index_cast %91 : i32 to index
    %c0_44 = arith.constant 0 : index
    %c0_45 = arith.constant 0 : index
    %93 = vector.load %arg14[%92, %c0_44, %c0_45] : memref<128x8x128xf32, #tpu.memory_space<vmem>>, vector<1x8x128xf32>
    %94 = vector.shape_cast %93 : vector<1x8x128xf32> to vector<8x128xf32>
    %95 = vector.broadcast %89 : vector<8x1xf32> to vector<8x128xf32>
    %96 = arith.mulf %95, %94 : vector<8x128xf32>
    %97 = vector.extract_strided_slice %61 {offsets = [0, 67], sizes = [8, 1], strides = [1, 1]} : vector<8x128xf32> to vector<8x1xf32>
    %c31_i32 = arith.constant 31 : i32
    %98 = arith.addi %63, %c31_i32 : i32
    %c127_i32_46 = arith.constant 127 : i32
    %99 = arith.andi %98, %c127_i32_46 : i32
    %100 = arith.index_cast %99 : i32 to index
    %c0_47 = arith.constant 0 : index
    %c0_48 = arith.constant 0 : index
    %101 = vector.load %arg14[%100, %c0_47, %c0_48] : memref<128x8x128xf32, #tpu.memory_space<vmem>>, vector<1x8x128xf32>
    %102 = vector.shape_cast %101 : vector<1x8x128xf32> to vector<8x128xf32>
    %103 = vector.broadcast %97 : vector<8x1xf32> to vector<8x128xf32>
    %104 = arith.mulf %103, %102 : vector<8x128xf32>
    %105 = vector.extract_strided_slice %61 {offsets = [0, 68], sizes = [8, 1], strides = [1, 1]} : vector<8x128xf32> to vector<8x1xf32>
    %c47_i32 = arith.constant 47 : i32
    %106 = arith.addi %63, %c47_i32 : i32
    %c127_i32_49 = arith.constant 127 : i32
    %107 = arith.andi %106, %c127_i32_49 : i32
    %108 = arith.index_cast %107 : i32 to index
    %c0_50 = arith.constant 0 : index
    %c0_51 = arith.constant 0 : index
    %109 = vector.load %arg14[%108, %c0_50, %c0_51] : memref<128x8x128xf32, #tpu.memory_space<vmem>>, vector<1x8x128xf32>
    %110 = vector.shape_cast %109 : vector<1x8x128xf32> to vector<8x128xf32>
    %111 = vector.broadcast %105 : vector<8x1xf32> to vector<8x128xf32>
    %112 = arith.mulf %111, %110 : vector<8x128xf32>
    %113 = vector.extract_strided_slice %61 {offsets = [0, 69], sizes = [8, 1], strides = [1, 1]} : vector<8x128xf32> to vector<8x1xf32>
    %c63_i32 = arith.constant 63 : i32
    %114 = arith.addi %63, %c63_i32 : i32
    %c127_i32_52 = arith.constant 127 : i32
    %115 = arith.andi %114, %c127_i32_52 : i32
    %116 = arith.index_cast %115 : i32 to index
    %c0_53 = arith.constant 0 : index
    %c0_54 = arith.constant 0 : index
    %117 = vector.load %arg14[%116, %c0_53, %c0_54] : memref<128x8x128xf32, #tpu.memory_space<vmem>>, vector<1x8x128xf32>
    %118 = vector.shape_cast %117 : vector<1x8x128xf32> to vector<8x128xf32>
    %119 = vector.broadcast %113 : vector<8x1xf32> to vector<8x128xf32>
    %120 = arith.mulf %119, %118 : vector<8x128xf32>
    %121 = vector.extract_strided_slice %61 {offsets = [0, 70], sizes = [8, 1], strides = [1, 1]} : vector<8x128xf32> to vector<8x1xf32>
    %c95_i32 = arith.constant 95 : i32
    %122 = arith.addi %63, %c95_i32 : i32
    %c127_i32_55 = arith.constant 127 : i32
    %123 = arith.andi %122, %c127_i32_55 : i32
    %124 = arith.index_cast %123 : i32 to index
    %c0_56 = arith.constant 0 : index
    %c0_57 = arith.constant 0 : index
    %125 = vector.load %arg14[%124, %c0_56, %c0_57] : memref<128x8x128xf32, #tpu.memory_space<vmem>>, vector<1x8x128xf32>
    %126 = vector.shape_cast %125 : vector<1x8x128xf32> to vector<8x128xf32>
    %127 = vector.broadcast %121 : vector<8x1xf32> to vector<8x128xf32>
    %128 = arith.mulf %127, %126 : vector<8x128xf32>
    %129 = vector.extract_strided_slice %61 {offsets = [0, 71], sizes = [8, 1], strides = [1, 1]} : vector<8x128xf32> to vector<8x1xf32>
    %c127_i32_58 = arith.constant 127 : i32
    %130 = arith.addi %63, %c127_i32_58 : i32
    %c127_i32_59 = arith.constant 127 : i32
    %131 = arith.andi %130, %c127_i32_59 : i32
    %132 = arith.index_cast %131 : i32 to index
    %c0_60 = arith.constant 0 : index
    %c0_61 = arith.constant 0 : index
    %133 = vector.load %arg14[%132, %c0_60, %c0_61] : memref<128x8x128xf32, #tpu.memory_space<vmem>>, vector<1x8x128xf32>
    %134 = vector.shape_cast %133 : vector<1x8x128xf32> to vector<8x128xf32>
    %135 = vector.broadcast %129 : vector<8x1xf32> to vector<8x128xf32>
    %136 = arith.mulf %135, %134 : vector<8x128xf32>
    %137 = arith.addf %80, %88 : vector<8x128xf32>
    %138 = arith.addf %96, %104 : vector<8x128xf32>
    %139 = arith.addf %137, %138 : vector<8x128xf32>
    %140 = arith.addf %112, %120 : vector<8x128xf32>
    %141 = arith.addf %128, %136 : vector<8x128xf32>
    %142 = arith.addf %140, %141 : vector<8x128xf32>
    %143 = arith.addf %139, %142 : vector<8x128xf32>
    %144 = arith.addf %143, %61 : vector<8x128xf32>
    %c0_62 = arith.constant 0 : index
    %c0_63 = arith.constant 0 : index
    %c0_64 = arith.constant 0 : index
    %145 = vector.load %arg11[%c0_62, %c0_63, %c0_64] : memref<1x8x128xf32, #tpu.memory_space<vmem>>, vector<1x8x128xf32>
    %146 = vector.shape_cast %145 : vector<1x8x128xf32> to vector<8x128xf32>
    %147 = vector.shape_cast %144 : vector<8x128xf32> to vector<1x8x128xf32>
    tpu.vector_store %arg11[%c0_62, %c0_63, %c0_64], %147 {strides = array<i32>} : memref<1x8x128xf32, #tpu.memory_space<vmem>>, vector<1x8x128xf32>,
    return
  }
  func.func @transform_0(%arg0: i32, %arg1: i32) -> (i32, i32, i32) {
    %c0_i32 = arith.constant 0 : i32
    %c0_i32_0 = arith.constant 0 : i32
    return %arg1, %arg0, %c0_i32 : i32, i32, i32
  }
  func.func @transform_1(%arg0: i32, %arg1: i32) -> (i32, i32) {
    %c0_i32 = arith.constant 0 : i32
    %c0_i32_0 = arith.constant 0 : i32
    return %arg0, %c0_i32 : i32, i32
  }
  func.func @transform_2(%arg0: i32, %arg1: i32) -> (i32, i32) {
    %c0_i32 = arith.constant 0 : i32
    %c0_i32_0 = arith.constant 0 : i32
    return %arg0, %c0_i32 : i32, i32
  }
  func.func @transform_3(%arg0: i32, %arg1: i32) -> (i32, i32, i32) {
    %c0_i32 = arith.constant 0 : i32
    %c0_i32_0 = arith.constant 0 : i32
    %c0_i32_1 = arith.constant 0 : i32
    return %c0_i32, %arg0, %c0_i32_0 : i32, i32, i32
  }
  func.func @transform_4(%arg0: i32, %arg1: i32) -> (i32, i32) {
    %c0_i32 = arith.constant 0 : i32
    %c0_i32_0 = arith.constant 0 : i32
    %c0_i32_1 = arith.constant 0 : i32
    return %c0_i32, %c0_i32_0 : i32, i32
  }
  func.func @transform_5(%arg0: i32, %arg1: i32) -> (i32, i32) {
    %c0_i32 = arith.constant 0 : i32
    %c0_i32_0 = arith.constant 0 : i32
    %c0_i32_1 = arith.constant 0 : i32
    return %c0_i32, %c0_i32_0 : i32, i32
  }
  func.func @transform_6(%arg0: i32, %arg1: i32) -> (i32, i32) {
    %c0_i32 = arith.constant 0 : i32
    %c0_i32_0 = arith.constant 0 : i32
    %c0_i32_1 = arith.constant 0 : i32
    return %c0_i32, %c0_i32_0 : i32, i32
  }
  func.func @transform_7(%arg0: i32, %arg1: i32) -> (i32, i32) {
    %c0_i32 = arith.constant 0 : i32
    %c0_i32_0 = arith.constant 0 : i32
    %c0_i32_1 = arith.constant 0 : i32
    return %c0_i32, %c0_i32_0 : i32, i32
  }
  func.func @transform_8(%arg0: i32, %arg1: i32) -> (i32, i32) {
    %c0_i32 = arith.constant 0 : i32
    %c0_i32_0 = arith.constant 0 : i32
    %c0_i32_1 = arith.constant 0 : i32
    return %c0_i32, %c0_i32_0 : i32, i32
  }
  func.func @transform_9(%arg0: i32, %arg1: i32) -> (i32, i32, i32) {
    %c0_i32 = arith.constant 0 : i32
    %c0_i32_0 = arith.constant 0 : i32
    return %arg1, %arg0, %c0_i32 : i32, i32, i32
  }
  func.func @transform_10(%arg0: i32, %arg1: i32) -> (i32, i32) {
    %c0_i32 = arith.constant 0 : i32
    %c0_i32_0 = arith.constant 0 : i32
    return %arg0, %c0_i32 : i32, i32
  }
  func.func @transform_11(%arg0: i32, %arg1: i32) -> (i32, i32) {
    %c0_i32 = arith.constant 0 : i32
    %c0_i32_0 = arith.constant 0 : i32
    return %arg0, %c0_i32 : i32, i32
  }
  func.func @transform_12(%arg0: i32, %arg1: i32) -> (i32, i32, i32) {
    %c0_i32 = arith.constant 0 : i32
    %c0_i32_0 = arith.constant 0 : i32
    %c0_i32_1 = arith.constant 0 : i32
    return %c0_i32, %arg0, %c0_i32_0 : i32, i32, i32
  }
}

</mosaic_0001>

<llo_original>
// kernel: tpu_custom_call.1
$region0: #{tpu_custom_call.1}
  #allocation0 [shape = 'u32[]', space=smem, size = 0x4, offset = 0x4, fixed_abs, tag = 'smem constant byte address 0x4 - core index']
  #allocation1 [shape = 'u32[144,128]{1,0:T(1,128)}', space=vmem, size = 0x12000, scoped, tag = 'internal scratch']
  %s0 = inlined_call_operand.hbm [shape: f32[6,8,128], index: 0, kind: input, shape index: {}]
  %s1 = inlined_call_operand.hbm [shape: f32[8,128], index: 1, kind: input, shape index: {}]
  %s2 = inlined_call_operand.hbm [shape: f32[8,128], index: 2, kind: input, shape index: {}]
  %s3 = inlined_call_operand.hbm [shape: f32[128,8,128], index: 3, kind: input, shape index: {}]
  %s4 = inlined_call_operand.hbm [shape: bf16[128,512], index: 4, kind: input, shape index: {}]
  %s5 = inlined_call_operand.hbm [shape: bf16[128,512], index: 5, kind: input, shape index: {}]
  %s6 = inlined_call_operand.vmem [shape: f32[1,512], index: 6, kind: input, shape index: {}]
  %s7 = inlined_call_operand.hbm [shape: bf16[128,128], index: 7, kind: input, shape index: {}]
  %s8 = inlined_call_operand.vmem [shape: f32[1,128], index: 8, kind: input, shape index: {}]
  %s9 = inlined_call_operand.hbm [shape: f32[6,8,128], index: 9, kind: output, shape index: {0}]
  %s10 = inlined_call_operand.hbm [shape: f32[8,128], index: 10, kind: output, shape index: {1}]
  %s11 = inlined_call_operand.hbm [shape: f32[8,128], index: 11, kind: output, shape index: {2}]
  %s12 = inlined_call_operand.hbm [shape: f32[128,8,128], index: 12, kind: output, shape index: {3}]
  %13 = xla_tuple %s9, %s10, %s11, %s12
  %s14 = sld [smem:[#allocation0]]
  $region125: #{tpu_custom_call.1} parent=0
    _
  %s16 = ssub.s32 1, %s14
  %s17 = scalar_select 0, %s16, %s14
  $region1: #{tpu_custom_call.1} parent=0
    #allocation2 [shape = 'u8[8192]{0}', space=vmem, size = 0x2000, scoped, tag = 'input window, operand 0']
    #allocation3 [shape = 's32[2]{0}', space=sflag, size = 0x8, scoped, tag = 'scoped memory for tpu_custom_call.1']
    #allocation4 [shape = 's32[2]{0}', space=sflag, size = 0x8, scoped, tag = 'scoped memory for tpu_custom_call.1']
    #allocation5 [shape = 'u8[4096]{0}', space=vmem, size = 0x1000, scoped, tag = 'input window, operand 1, single buffered']
    #allocation6 [shape = 's32[1]{0}', space=sflag, size = 0x4, scoped, tag = 'scoped memory for tpu_custom_call.1']
    #allocation7 [shape = 'u8[4096]{0}', space=vmem, size = 0x1000, scoped, tag = 'input window, operand 2, single buffered']
    #allocation8 [shape = 'u8[524288]{0}', space=vmem, size = 0x80000, scoped, tag = 'input window, operand 3, single buffered']
    #allocation9 [shape = 's32[1]{0}', space=sflag, size = 0x4, scoped, tag = 'scoped memory for tpu_custom_call.1']
    #allocation10 [shape = 'u8[131072]{0}', space=vmem, size = 0x20000, scoped, tag = 'input window, operand 4, single buffered']
    #allocation11 [shape = 'u8[131072]{0}', space=vmem, size = 0x20000, scoped, tag = 'input window, operand 5, single buffered']
    #allocation12 [shape = 's32[1]{0}', space=sflag, size = 0x4, scoped, tag = 'scoped memory for tpu_custom_call.1']
    #allocation13 [shape = 'u8[32768]{0}', space=vmem, size = 0x8000, scoped, tag = 'input window, operand 7, single buffered']
    #allocation14 [shape = 'u8[8192]{0}', space=vmem, size = 0x2000, scoped, tag = 'output window, operand 0']
    #allocation15 [shape = 'u8[4096]{0}', space=vmem, size = 0x1000, scoped, tag = 'output window, operand 1, single buffered']
    #allocation16 [shape = 's32[1]{0}', space=sflag, size = 0x4, scoped, tag = 'scoped memory for tpu_custom_call.1']
    #allocation17 [shape = 'u8[4096]{0}', space=vmem, size = 0x1000, scoped, tag = 'output window, operand 2, single buffered']
    #allocation18 [shape = 'u8[524288]{0}', space=vmem, size = 0x80000, scoped, tag = 'output window, operand 3, single buffered']
    #allocation19 [shape = 's32[1]{0}', space=sflag, size = 0x4, scoped, tag = 'scoped memory for tpu_custom_call.1']
    %18 = vsyncpa [#allocation3], 0
    %s19 = scalar_lea.sflag [#allocation3], 1
    %20 = vsyncpa %s19, 0
    %21 = vsyncpa [#allocation6], 0
    %22 = vsyncpa [#allocation9], 0
    %23 = vsyncpa [#allocation12], 0
    %24 = vsyncpa [#allocation4], 0
    %s25 = scalar_lea.sflag [#allocation4], 1
    %26 = vsyncpa %s25, 0
    %27 = vsyncpa [#allocation16], 0
    %28 = vsyncpa [#allocation19], 0
    loop: start=0, step=1, limit=8
    $region2: #{tpu_custom_call.1} parent=1 // loop_pre_header
      _
    $region3: #{tpu_custom_call.1} parent=1 // loop_header
      %s30 = sphi 0, %s34
      %p31 = scmp.ge.s32.totalorder %s30, 8
      %s37 = sphi 0, %s49
      %s38 = sphi 0, %s45
      %s39 = sphi 0, %s37
      %s40 = sphi 0, %s38
      %s41 = sphi 0, %s39
      %s42 = sphi 0, %s40
      %s54 = sphi 0, %s56
      %s57 = sphi 0, %s54
      %s58 = sphi 0, %s57
      %s74 = sphi 0, %s58
      %s80 = sphi 0, %s82
      %s83 = sphi 0, %s80
      %s84 = sphi 0, %s83
      %s100 = sphi 0, %s84
      %s106 = sphi 0, %s108
      %s109 = sphi 0, %s106
      %s110 = sphi 0, %s109
      %s126 = sphi 0, %s110
      %s132 = sphi 0, %s134
      %s135 = sphi 0, %s132
      %s136 = sphi 0, %s135
      %s152 = sphi 0, %s136
      %s156 = sphi 0, %s156
      %s158 = sphi 0, %s156
      %s159 = sphi 0, %s158
      %s173 = sphi 0, %s159
      %s177 = sphi 0, %s177
      %s179 = sphi 0, %s177
      %s180 = sphi 0, %s179
      %s194 = sphi 0, %s180
      %s198 = sphi 0, %s198
      %s200 = sphi 0, %s198
      %s201 = sphi 0, %s200
      %s215 = sphi 0, %s201
      %s219 = sphi 0, %s219
      %s221 = sphi 0, %s219
      %s222 = sphi 0, %s221
      %s236 = sphi 0, %s222
      %s240 = sphi 0, %s240
      %s242 = sphi 0, %s240
      %s243 = sphi 0, %s242
      %s257 = sphi 0, %s243
      %s265 = sphi 0, %s267
      %s268 = sphi 0, %s265
      %s269 = sphi 0, %s268
      %s285 = sphi 0, %s269
      %s291 = sphi 0, %s293
      %s294 = sphi 0, %s291
      %s295 = sphi 0, %s294
      %s311 = sphi 0, %s295
      %s317 = sphi 0, %s319
      %s320 = sphi 0, %s317
      %s321 = sphi 0, %s320
      %s337 = sphi 0, %s321
      %s343 = sphi 0, %s345
      %s346 = sphi 0, %s343
      %s347 = sphi 0, %s346
      %s363 = sphi 0, %s347
    $region4: #{tpu_custom_call.1} parent=1 // loop_header_branch
      %33 = sbr.rel (%p31) target = $region8
    $region5: #{tpu_custom_call.1} parent=1 // loop_body
      %s35 = ssub.s32 %s30, 1
      %s36 = ssub.s32 %s30, 2
      %s43 = sadd.s32 1, %s38
      %p44 = scmp.ge.s32.totalorder %s43, 6
      %s45 = scalar_select %p44, 0, %s43
      %s46 = sadd.s32 1, %s37
      %s47 = scalar_select %p44, %s46, %s37
      %p48 = scmp.ge.s32.totalorder %s47, 1
      %s49 = scalar_select %p48, 0, %s47
      %s50 = ssub.s32 %s38, %s45
      %s51 = ssub.s32 %s37, %s49
      %s52 = sor.u32 %s50, %s51
      %p53 = scmp.eq.s32.totalorder %s52, 0
      %s55 = sadd.s32 %s54, 1
      %s56 = scalar_select %p53, %s54, %s55
      %p59 = pneg %p53
      %p60 = scmp.eq.s32.totalorder %s30, 5
      %p61 = por %p59, %p60
      %p62 = scmp.ne.s32.totalorder %s54, %s57
      %p63 = scmp.eq.s32.totalorder %s30, 0
      %p64 = por %p62, %p63
      %p65 = scmp.ne.s32.totalorder %s54, %s57
      %p66 = scmp.eq.s32.totalorder %s35, 5
      %p67 = por %p65, %p66
      %p68 = scmp.ne.s32.totalorder %s57, %s58
      %p69 = scmp.eq.s32.totalorder %s35, 0
      %p70 = por %p68, %p69
      %p71 = scmp.ne.s32.totalorder %s57, %s58
      %p72 = scmp.eq.s32.totalorder %s36, 5
      %p73 = por %p71, %p72
      %p75 = scmp.ne.s32.totalorder %s58, %s74
      %p76 = scmp.eq.s32.totalorder %s36, 0
      %p77 = por %p75, %p76
      %s78 = ssub.s32 %s37, %s49
      %p79 = scmp.eq.s32.totalorder %s78, 0
      %s81 = sadd.s32 %s80, 1
      %s82 = scalar_select %p79, %s80, %s81
      %p85 = pneg %p79
      %p86 = scmp.eq.s32.totalorder %s30, 5
      %p87 = por %p85, %p86
      %p88 = scmp.ne.s32.totalorder %s80, %s83
      %p89 = scmp.eq.s32.totalorder %s30, 0
      %p90 = por %p88, %p89
      %p91 = scmp.ne.s32.totalorder %s80, %s83
      %p92 = scmp.eq.s32.totalorder %s35, 5
      %p93 = por %p91, %p92
      %p94 = scmp.ne.s32.totalorder %s83, %s84
      %p95 = scmp.eq.s32.totalorder %s35, 0
      %p96 = por %p94, %p95
      %p97 = scmp.ne.s32.totalorder %s83, %s84
      %p98 = scmp.eq.s32.totalorder %s36, 5
      %p99 = por %p97, %p98
      %p101 = scmp.ne.s32.totalorder %s84, %s100
      %p102 = scmp.eq.s32.totalorder %s36, 0
      %p103 = por %p101, %p102
      %s104 = ssub.s32 %s37, %s49
      %p105 = scmp.eq.s32.totalorder %s104, 0
      %s107 = sadd.s32 %s106, 1
      %s108 = scalar_select %p105, %s106, %s107
      %p111 = pneg %p105
      %p112 = scmp.eq.s32.totalorder %s30, 5
      %p113 = por %p111, %p112
      %p114 = scmp.ne.s32.totalorder %s106, %s109
      %p115 = scmp.eq.s32.totalorder %s30, 0
      %p116 = por %p114, %p115
      %p117 = scmp.ne.s32.totalorder %s106, %s109
      %p118 = scmp.eq.s32.totalorder %s35, 5
      %p119 = por %p117, %p118
      %p120 = scmp.ne.s32.totalorder %s109, %s110
      %p121 = scmp.eq.s32.totalorder %s35, 0
      %p122 = por %p120, %p121
      %p123 = scmp.ne.s32.totalorder %s109, %s110
      %p124 = scmp.eq.s32.totalorder %s36, 5
      %p125 = por %p123, %p124
      %p127 = scmp.ne.s32.totalorder %s110, %s126
      %p128 = scmp.eq.s32.totalorder %s36, 0
      %p129 = por %p127, %p128
      %s130 = ssub.s32 %s37, %s49
      %p131 = scmp.eq.s32.totalorder %s130, 0
      %s133 = sadd.s32 %s132, 1
      %s134 = scalar_select %p131, %s132, %s133
      %p137 = pneg %p131
      %p138 = scmp.eq.s32.totalorder %s30, 5
      %p139 = por %p137, %p138
      %p140 = scmp.ne.s32.totalorder %s132, %s135
      %p141 = scmp.eq.s32.totalorder %s30, 0
      %p142 = por %p140, %p141
      %p143 = scmp.ne.s32.totalorder %s132, %s135
      %p144 = scmp.eq.s32.totalorder %s35, 5
      %p145 = por %p143, %p144
      %p146 = scmp.ne.s32.totalorder %s135, %s136
      %p147 = scmp.eq.s32.totalorder %s35, 0
      %p148 = por %p146, %p147
      %p149 = scmp.ne.s32.totalorder %s135, %s136
      %p150 = scmp.eq.s32.totalorder %s36, 5
      %p151 = por %p149, %p150
      %p153 = scmp.ne.s32.totalorder %s136, %s152
      %p154 = scmp.eq.s32.totalorder %s36, 0
      %p155 = por %p153, %p154
      %s157 = sadd.s32 %s156, 1
      %p160 = scmp.eq.s32.totalorder %s30, 5
      %p161 = scmp.ne.s32.totalorder %s156, %s158
      %p162 = scmp.eq.s32.totalorder %s30, 0
      %p163 = por %p161, %p162
      %p164 = scmp.ne.s32.totalorder %s156, %s158
      %p165 = scmp.eq.s32.totalorder %s35, 5
      %p166 = por %p164, %p165
      %p167 = scmp.ne.s32.totalorder %s158, %s159
      %p168 = scmp.eq.s32.totalorder %s35, 0
      %p169 = por %p167, %p168
      %p170 = scmp.ne.s32.totalorder %s158, %s159
      %p171 = scmp.eq.s32.totalorder %s36, 5
      %p172 = por %p170, %p171
      %p174 = scmp.ne.s32.totalorder %s159, %s173
      %p175 = scmp.eq.s32.totalorder %s36, 0
      %p176 = por %p174, %p175
      %s178 = sadd.s32 %s177, 1
      %p181 = scmp.eq.s32.totalorder %s30, 5
      %p182 = scmp.ne.s32.totalorder %s177, %s179
      %p183 = scmp.eq.s32.totalorder %s30, 0
      %p184 = por %p182, %p183
      %p185 = scmp.ne.s32.totalorder %s177, %s179
      %p186 = scmp.eq.s32.totalorder %s35, 5
      %p187 = por %p185, %p186
      %p188 = scmp.ne.s32.totalorder %s179, %s180
      %p189 = scmp.eq.s32.totalorder %s35, 0
      %p190 = por %p188, %p189
      %p191 = scmp.ne.s32.totalorder %s179, %s180
      %p192 = scmp.eq.s32.totalorder %s36, 5
      %p193 = por %p191, %p192
      %p195 = scmp.ne.s32.totalorder %s180, %s194
      %p196 = scmp.eq.s32.totalorder %s36, 0
      %p197 = por %p195, %p196
      %s199 = sadd.s32 %s198, 1
      %p202 = scmp.eq.s32.totalorder %s30, 5
      %p203 = scmp.ne.s32.totalorder %s198, %s200
      %p204 = scmp.eq.s32.totalorder %s30, 0
      %p205 = por %p203, %p204
      %p206 = scmp.ne.s32.totalorder %s198, %s200
      %p207 = scmp.eq.s32.totalorder %s35, 5
      %p208 = por %p206, %p207
      %p209 = scmp.ne.s32.totalorder %s200, %s201
      %p210 = scmp.eq.s32.totalorder %s35, 0
      %p211 = por %p209, %p210
      %p212 = scmp.ne.s32.totalorder %s200, %s201
      %p213 = scmp.eq.s32.totalorder %s36, 5
      %p214 = por %p212, %p213
      %p216 = scmp.ne.s32.totalorder %s201, %s215
      %p217 = scmp.eq.s32.totalorder %s36, 0
      %p218 = por %p216, %p217
      %s220 = sadd.s32 %s219, 1
      %p223 = scmp.eq.s32.totalorder %s30, 5
      %p224 = scmp.ne.s32.totalorder %s219, %s221
      %p225 = scmp.eq.s32.totalorder %s30, 0
      %p226 = por %p224, %p225
      %p227 = scmp.ne.s32.totalorder %s219, %s221
      %p228 = scmp.eq.s32.totalorder %s35, 5
      %p229 = por %p227, %p228
      %p230 = scmp.ne.s32.totalorder %s221, %s222
      %p231 = scmp.eq.s32.totalorder %s35, 0
      %p232 = por %p230, %p231
      %p233 = scmp.ne.s32.totalorder %s221, %s222
      %p234 = scmp.eq.s32.totalorder %s36, 5
      %p235 = por %p233, %p234
      %p237 = scmp.ne.s32.totalorder %s222, %s236
      %p238 = scmp.eq.s32.totalorder %s36, 0
      %p239 = por %p237, %p238
      %s241 = sadd.s32 %s240, 1
      %p244 = scmp.eq.s32.totalorder %s30, 5
      %p245 = scmp.ne.s32.totalorder %s240, %s242
      %p246 = scmp.eq.s32.totalorder %s30, 0
      %p247 = por %p245, %p246
      %p248 = scmp.ne.s32.totalorder %s240, %s242
      %p249 = scmp.eq.s32.totalorder %s35, 5
      %p250 = por %p248, %p249
      %p251 = scmp.ne.s32.totalorder %s242, %s243
      %p252 = scmp.eq.s32.totalorder %s35, 0
      %p253 = por %p251, %p252
      %p254 = scmp.ne.s32.totalorder %s242, %s243
      %p255 = scmp.eq.s32.totalorder %s36, 5
      %p256 = por %p254, %p255
      %p258 = scmp.ne.s32.totalorder %s243, %s257
      %p259 = scmp.eq.s32.totalorder %s36, 0
      %p260 = por %p258, %p259
      %s261 = ssub.s32 %s38, %s45
      %s262 = ssub.s32 %s37, %s49
      %s263 = sor.u32 %s261, %s262
      %p264 = scmp.eq.s32.totalorder %s263, 0
      %s266 = sadd.s32 %s265, 1
      %s267 = scalar_select %p264, %s265, %s266
      %p270 = pneg %p264
      %p271 = scmp.eq.s32.totalorder %s30, 5
      %p272 = por %p270, %p271
      %p273 = scmp.ne.s32.totalorder %s265, %s268
      %p274 = scmp.eq.s32.totalorder %s30, 0
      %p275 = por %p273, %p274
      %p276 = scmp.ne.s32.totalorder %s265, %s268
      %p277 = scmp.eq.s32.totalorder %s35, 5
      %p278 = por %p276, %p277
      %p279 = scmp.ne.s32.totalorder %s268, %s269
      %p280 = scmp.eq.s32.totalorder %s35, 0
      %p281 = por %p279, %p280
      %p282 = scmp.ne.s32.totalorder %s268, %s269
      %p283 = scmp.eq.s32.totalorder %s36, 5
      %p284 = por %p282, %p283
      %p286 = scmp.ne.s32.totalorder %s269, %s285
      %p287 = scmp.eq.s32.totalorder %s36, 0
      %p288 = por %p286, %p287
      %s289 = ssub.s32 %s37, %s49
      %p290 = scmp.eq.s32.totalorder %s289, 0
      %s292 = sadd.s32 %s291, 1
      %s293 = scalar_select %p290, %s291, %s292
      %p296 = pneg %p290
      %p297 = scmp.eq.s32.totalorder %s30, 5
      %p298 = por %p296, %p297
      %p299 = scmp.ne.s32.totalorder %s291, %s294
      %p300 = scmp.eq.s32.totalorder %s30, 0
      %p301 = por %p299, %p300
      %p302 = scmp.ne.s32.totalorder %s291, %s294
      %p303 = scmp.eq.s32.totalorder %s35, 5
      %p304 = por %p302, %p303
      %p305 = scmp.ne.s32.totalorder %s294, %s295
      %p306 = scmp.eq.s32.totalorder %s35, 0
      %p307 = por %p305, %p306
      %p308 = scmp.ne.s32.totalorder %s294, %s295
      %p309 = scmp.eq.s32.totalorder %s36, 5
      %p310 = por %p308, %p309
      %p312 = scmp.ne.s32.totalorder %s295, %s311
      %p313 = scmp.eq.s32.totalorder %s36, 0
      %p314 = por %p312, %p313
      %s315 = ssub.s32 %s37, %s49
      %p316 = scmp.eq.s32.totalorder %s315, 0
      %s318 = sadd.s32 %s317, 1
      %s319 = scalar_select %p316, %s317, %s318
      %p322 = pneg %p316
      %p323 = scmp.eq.s32.totalorder %s30, 5
      %p324 = por %p322, %p323
      %p325 = scmp.ne.s32.totalorder %s317, %s320
      %p326 = scmp.eq.s32.totalorder %s30, 0
      %p327 = por %p325, %p326
      %p328 = scmp.ne.s32.totalorder %s317, %s320
      %p329 = scmp.eq.s32.totalorder %s35, 5
      %p330 = por %p328, %p329
      %p331 = scmp.ne.s32.totalorder %s320, %s321
      %p332 = scmp.eq.s32.totalorder %s35, 0
      %p333 = por %p331, %p332
      %p334 = scmp.ne.s32.totalorder %s320, %s321
      %p335 = scmp.eq.s32.totalorder %s36, 5
      %p336 = por %p334, %p335
      %p338 = scmp.ne.s32.totalorder %s321, %s337
      %p339 = scmp.eq.s32.totalorder %s36, 0
      %p340 = por %p338, %p339
      %s341 = ssub.s32 %s37, %s49
      %p342 = scmp.eq.s32.totalorder %s341, 0
      %s344 = sadd.s32 %s343, 1
      %s345 = scalar_select %p342, %s343, %s344
      %p348 = pneg %p342
      %p349 = scmp.eq.s32.totalorder %s30, 5
      %p350 = por %p348, %p349
      %p351 = scmp.ne.s32.totalorder %s343, %s346
      %p352 = scmp.eq.s32.totalorder %s30, 0
      %p353 = por %p351, %p352
      %p354 = scmp.ne.s32.totalorder %s343, %s346
      %p355 = scmp.eq.s32.totalorder %s35, 5
      %p356 = por %p354, %p355
      %p357 = scmp.ne.s32.totalorder %s346, %s347
      %p358 = scmp.eq.s32.totalorder %s35, 0
      %p359 = por %p357, %p358
      %p360 = scmp.ne.s32.totalorder %s346, %s347
      %p361 = scmp.eq.s32.totalorder %s36, 5
      %p362 = por %p360, %p361
      %p364 = scmp.ne.s32.totalorder %s347, %s363
      %p365 = scmp.eq.s32.totalorder %s36, 0
      %p366 = por %p364, %p365
      %p367 = scmp.le.s32.totalorder 1, %s30
      %p368 = scmp.lt.s32.totalorder %s30, 7
      %p369 = pnand %p367, %p368
      %p370 = pneg %p369
      // Predicated region
      $region9: #{tpu_custom_call.1} parent=5 // pred_check
        _
      $region10: #{tpu_custom_call.1} parent=5 // pred_check_branch
        %372 = sbr.rel (%p369) target = $region12
      $region11: #{tpu_custom_call.1} parent=5 // pred_region
        %s373 = ssub.s32 %s30, 1
        // Predicated region
        $region13: #{tpu_custom_call.1} parent=11 // pred_check
          %p374 = pneg %p96
        $region14: #{tpu_custom_call.1} parent=11 // pred_check_branch
          %376 = sbr.rel (%p374) target = $region16
        $region15: #{tpu_custom_call.1} parent=11 // pred_region
          %s378 = ssub.s32 128, 128
          %379 = vsyncadd [#allocation6], %s378
          %s380 = smul.addr %s39, 128
          %s381 = scalar_lea.hbm %s1, %s380
          %s383 = sshll.u32 [#allocation5], 4
          %s384 = int_to_ptr.vmem [resolvable:$true] %s383
          %386 = dma.hbm_to_vmem [thread:$0]  %s381, 128, %s384, [#allocation6]
        $region16: #{tpu_custom_call.1} parent=11 // pred_fallthru
          _
        // Predicated region
        $region17: #{tpu_custom_call.1} parent=11 // pred_check
          %p387 = pneg %p122
        $region18: #{tpu_custom_call.1} parent=11 // pred_check_branch
          %389 = sbr.rel (%p387) target = $region20
        $region19: #{tpu_custom_call.1} parent=11 // pred_region
          %s391 = ssub.s32 128, 128
          %392 = vsyncadd [#allocation6], %s391
          %s393 = smul.addr %s39, 128
          %s394 = scalar_lea.hbm %s2, %s393
          %s396 = sshll.u32 [#allocation7], 4
          %s397 = int_to_ptr.vmem [resolvable:$true] %s396
          %399 = dma.hbm_to_vmem [thread:$0]  %s394, 128, %s397, [#allocation6]
        $region20: #{tpu_custom_call.1} parent=11 // pred_fallthru
          _
        // Predicated region
        $region21: #{tpu_custom_call.1} parent=11 // pred_check
          %p400 = pneg %p148
        $region22: #{tpu_custom_call.1} parent=11 // pred_check_branch
          %402 = sbr.rel (%p400) target = $region24
        $region23: #{tpu_custom_call.1} parent=11 // pred_region
          %s404 = ssub.s32 16384, 16384
          %405 = vsyncadd [#allocation9], %s404
          %s406 = smul.addr %s39, 128
          %s407 = scalar_lea.hbm %s3, %s406
          %s408 = sshll.u32 [#allocation8], 4
          %s409 = int_to_ptr.vmem [resolvable:$true] %s408
          %414 = dma.hbm_to_vmem [thread:$0]  %s407, 16384, %s409, [#allocation9], 128, 128, 8
        $region24: #{tpu_custom_call.1} parent=11 // pred_fallthru
          _
        // Predicated region
        $region25: #{tpu_custom_call.1} parent=11 // pred_check
          %p415 = pneg %p169
        $region26: #{tpu_custom_call.1} parent=11 // pred_check_branch
          %417 = sbr.rel (%p415) target = $region28
        $region27: #{tpu_custom_call.1} parent=11 // pred_region
          %s419 = ssub.s32 4096, 4096
          %420 = vsyncadd [#allocation9], %s419
          %s421 = sshll.u32 [#allocation10], 4
          %s422 = int_to_ptr.vmem [resolvable:$true] %s421
          %427 = dma.hbm_to_vmem [thread:$0]  %s4, 4096, %s422, [#allocation9], 256, 256, 16
        $region28: #{tpu_custom_call.1} parent=11 // pred_fallthru
          _
        // Predicated region
        $region29: #{tpu_custom_call.1} parent=11 // pred_check
          %p428 = pneg %p190
        $region30: #{tpu_custom_call.1} parent=11 // pred_check_branch
          %430 = sbr.rel (%p428) target = $region32
        $region31: #{tpu_custom_call.1} parent=11 // pred_region
          %s432 = ssub.s32 4096, 4096
          %433 = vsyncadd [#allocation12], %s432
          %s434 = sshll.u32 [#allocation11], 4
          %s435 = int_to_ptr.vmem [resolvable:$true] %s434
          %440 = dma.hbm_to_vmem [thread:$0]  %s5, 4096, %s435, [#allocation12], 256, 256, 16
        $region32: #{tpu_custom_call.1} parent=11 // pred_fallthru
          _
        // Predicated region
        $region33: #{tpu_custom_call.1} parent=11 // pred_check
          %p441 = pneg %p211
        $region34: #{tpu_custom_call.1} parent=11 // pred_check_branch
          %443 = sbr.rel (%p441) target = $region36
        $region35: #{tpu_custom_call.1} parent=11 // pred_region
          _
        $region36: #{tpu_custom_call.1} parent=11 // pred_fallthru
          _
        // Predicated region
        $region37: #{tpu_custom_call.1} parent=11 // pred_check
          %p444 = pneg %p232
        $region38: #{tpu_custom_call.1} parent=11 // pred_check_branch
          %446 = sbr.rel (%p444) target = $region40
        $region39: #{tpu_custom_call.1} parent=11 // pred_region
          %s448 = ssub.s32 1024, 1024
          %449 = vsyncadd [#allocation12], %s448
          %s450 = sshll.u32 [#allocation13], 4
          %s451 = int_to_ptr.vmem [resolvable:$true] %s450
          %456 = dma.hbm_to_vmem [thread:$0]  %s7, 1024, %s451, [#allocation12], 64, 64, 4
        $region40: #{tpu_custom_call.1} parent=11 // pred_fallthru
          _
        // Predicated region
        $region41: #{tpu_custom_call.1} parent=11 // pred_check
          %p457 = pneg %p253
        $region42: #{tpu_custom_call.1} parent=11 // pred_check_branch
          %459 = sbr.rel (%p457) target = $region44
        $region43: #{tpu_custom_call.1} parent=11 // pred_region
          _
        $region44: #{tpu_custom_call.1} parent=11 // pred_fallthru
          _
      $region12: #{tpu_custom_call.1} parent=5 // pred_fallthru
        _
      %p460 = scmp.lt.s32.totalorder %s30, 6
      // Predicated region
      $region45: #{tpu_custom_call.1} parent=5 // pred_check
        %p461 = pneg %p460
      $region46: #{tpu_custom_call.1} parent=5 // pred_check_branch
        %463 = sbr.rel (%p461) target = $region48
      $region47: #{tpu_custom_call.1} parent=5 // pred_region
        // Predicated region
        $region49: #{tpu_custom_call.1} parent=47 // pred_check
          %p464 = pneg %p64
        $region50: #{tpu_custom_call.1} parent=47 // pred_check_branch
          %466 = sbr.rel (%p464) target = $region52
        $region51: #{tpu_custom_call.1} parent=47 // pred_region
          %s467 = sand.u32 %s54, 1
          %s468 = scalar_lea.sflag [#allocation3], %s467
          %s469 = sand.u32 %s54, 1
          %s470 = smul.addr %s469, 8
          %s471 = scalar_lea.vmem [#allocation2], %s470
          %s473 = ssub.s32 128, 128
          %474 = vsyncadd %s468, %s473
          %s475 = sadd.s32 %s37, %s38
          %s476 = smul.addr %s475, 128
          %s477 = scalar_lea.hbm %s0, %s476
          %s479 = sshll.u32 %s471, 4
          %s480 = int_to_ptr.vmem [resolvable:$true] %s479
          %482 = dma.hbm_to_vmem [thread:$0]  %s477, 128, %s480, %s468
        $region52: #{tpu_custom_call.1} parent=47 // pred_fallthru
          _
      $region48: #{tpu_custom_call.1} parent=5 // pred_fallthru
        _
      %p483 = scmp.le.s32.totalorder 1, %s30
      %p484 = scmp.lt.s32.totalorder %s30, 7
      %p485 = pnand %p483, %p484
      %p486 = pneg %p485
      // Predicated region
      $region53: #{tpu_custom_call.1} parent=5 // pred_check
        _
      $region54: #{tpu_custom_call.1} parent=5 // pred_check_branch
        %488 = sbr.rel (%p485) target = $region56
      $region55: #{tpu_custom_call.1} parent=5 // pred_region
        %s489 = ssub.s32 %s30, 1
        %s490 = sand.u32 %s57, 1
        %s491 = scalar_lea.sflag [#allocation3], %s490
        %s492 = sand.u32 %s57, 1
        %s493 = smul.addr %s492, 8
        %s494 = scalar_lea.vmem [#allocation2], %s493
        // Predicated region
        $region57: #{tpu_custom_call.1} parent=55 // pred_check
          %p495 = pneg %p70
        $region58: #{tpu_custom_call.1} parent=55 // pred_check_branch
          %497 = sbr.rel (%p495) target = $region60
        $region59: #{tpu_custom_call.1} parent=55 // pred_region
          %498 = dma.done %s491, 128
        $region60: #{tpu_custom_call.1} parent=55 // pred_fallthru
          _
        // Predicated region
        $region61: #{tpu_custom_call.1} parent=55 // pred_check
          %p499 = pneg %p96
        $region62: #{tpu_custom_call.1} parent=55 // pred_check_branch
          %501 = sbr.rel (%p499) target = $region64
        $region63: #{tpu_custom_call.1} parent=55 // pred_region
          %502 = dma.done [#allocation6], 128
        $region64: #{tpu_custom_call.1} parent=55 // pred_fallthru
          _
        // Predicated region
        $region65: #{tpu_custom_call.1} parent=55 // pred_check
          %p503 = pneg %p122
        $region66: #{tpu_custom_call.1} parent=55 // pred_check_branch
          %505 = sbr.rel (%p503) target = $region68
        $region67: #{tpu_custom_call.1} parent=55 // pred_region
          %506 = dma.done [#allocation6], 128
        $region68: #{tpu_custom_call.1} parent=55 // pred_fallthru
          _
        // Predicated region
        $region69: #{tpu_custom_call.1} parent=55 // pred_check
          %p507 = pneg %p148
        $region70: #{tpu_custom_call.1} parent=55 // pred_check_branch
          %509 = sbr.rel (%p507) target = $region72
        $region71: #{tpu_custom_call.1} parent=55 // pred_region
          %510 = dma.done [#allocation9], 16384
        $region72: #{tpu_custom_call.1} parent=55 // pred_fallthru
          _
        // Predicated region
        $region73: #{tpu_custom_call.1} parent=55 // pred_check
          %p511 = pneg %p169
        $region74: #{tpu_custom_call.1} parent=55 // pred_check_branch
          %513 = sbr.rel (%p511) target = $region76
        $region75: #{tpu_custom_call.1} parent=55 // pred_region
          %514 = dma.done [#allocation9], 4096
        $region76: #{tpu_custom_call.1} parent=55 // pred_fallthru
          _
        // Predicated region
        $region77: #{tpu_custom_call.1} parent=55 // pred_check
          %p515 = pneg %p190
        $region78: #{tpu_custom_call.1} parent=55 // pred_check_branch
          %517 = sbr.rel (%p515) target = $region80
        $region79: #{tpu_custom_call.1} parent=55 // pred_region
          %518 = dma.done [#allocation12], 4096
        $region80: #{tpu_custom_call.1} parent=55 // pred_fallthru
          _
        // Predicated region
        $region81: #{tpu_custom_call.1} parent=55 // pred_check
          %p519 = pneg %p232
        $region82: #{tpu_custom_call.1} parent=55 // pred_check_branch
          %521 = sbr.rel (%p519) target = $region84
        $region83: #{tpu_custom_call.1} parent=55 // pred_region
          %522 = dma.done [#allocation12], 1024
        $region84: #{tpu_custom_call.1} parent=55 // pred_fallthru
          _
        %s523 = sand.u32 %s57, 1
        %s524 = scalar_lea.sflag [#allocation3], %s523
        %s525 = sand.u32 %s57, 1
        %s526 = smul.addr %s525, 8
        %s527 = scalar_lea.vmem [#allocation2], %s526
        %p528 = pneg %p70
        %p529 = pneg %p67
        %p530 = pneg %p96
        %p531 = pneg %p93
        %p532 = pneg %p122
        %p533 = pneg %p119
        %p534 = pneg %p148
        %p535 = pneg %p145
        %p536 = pneg %p169
        %p537 = pneg %p166
        %p538 = pneg %p190
        %p539 = pneg %p187
        %p540 = pneg %p211
        %p541 = pneg %p208
        %p542 = pneg %p232
        %p543 = pneg %p229
        %p544 = pneg %p253
        %p545 = pneg %p250
        %p546 = pneg %p281
        %p547 = pneg %p278
        %s548 = sand.u32 %s268, 1
        %s549 = scalar_lea.sflag [#allocation4], %s548
        %s550 = sand.u32 %s268, 1
        %s551 = smul.addr %s550, 8
        %s552 = scalar_lea.vmem [#allocation14], %s551
        %p553 = pneg %p307
        %p554 = pneg %p304
        %p555 = pneg %p333
        %p556 = pneg %p330
        %p557 = pneg %p359
        %p558 = pneg %p356
        %p560 = scmp.eq.s32.totalorder %s40, 0
        // Predicated region
        $region85: #{tpu_custom_call.1} parent=55 // pred_check
          %p561 = pneg %p560
        $region86: #{tpu_custom_call.1} parent=55 // pred_check_branch
          %563 = sbr.rel (%p561) target = $region88
        $region87: #{tpu_custom_call.1} parent=55 // pred_region
          %v564 = vld [vmem:[#allocation5] sm:$0xff]
          %565 = vst [vmem:[#allocation15] sm:$0xff] %v564
          %v566 = vld [vmem:[#allocation7] sm:$0xff]
          %567 = vst [vmem:[#allocation17] sm:$0xff] %v566
          %v568 = vld [vmem:[#allocation8] sm:$0xff]
          %v569 = vld [vmem:[#allocation8 + $0x8] sm:$0xff]
          %v570 = vld [vmem:[#allocation8 + $0x10] sm:$0xff]
          %v571 = vld [vmem:[#allocation8 + $0x18] sm:$0xff]
          %v572 = vld [vmem:[#allocation8 + $0x20] sm:$0xff]
          %v573 = vld [vmem:[#allocation8 + $0x28] sm:$0xff]
          %v574 = vld [vmem:[#allocation8 + $0x30] sm:$0xff]
          %v575 = vld [vmem:[#allocation8 + $0x38] sm:$0xff]
          %v576 = vld [vmem:[#allocation8 + $0x40] sm:$0xff]
          %v577 = vld [vmem:[#allocation8 + $0x48] sm:$0xff]
          %v578 = vld [vmem:[#allocation8 + $0x50] sm:$0xff]
          %v579 = vld [vmem:[#allocation8 + $0x58] sm:$0xff]
          %v580 = vld [vmem:[#allocation8 + $0x60] sm:$0xff]
          %v581 = vld [vmem:[#allocation8 + $0x68] sm:$0xff]
          %v582 = vld [vmem:[#allocation8 + $0x70] sm:$0xff]
          %v583 = vld [vmem:[#allocation8 + $0x78] sm:$0xff]
          %v584 = vld [vmem:[#allocation8 + $0x80] sm:$0xff]
          %v585 = vld [vmem:[#allocation8 + $0x88] sm:$0xff]
          %v586 = vld [vmem:[#allocation8 + $0x90] sm:$0xff]
          %v587 = vld [vmem:[#allocation8 + $0x98] sm:$0xff]
          %v588 = vld [vmem:[#allocation8 + $0xa0] sm:$0xff]
          %v589 = vld [vmem:[#allocation8 + $0xa8] sm:$0xff]
          %v590 = vld [vmem:[#allocation8 + $0xb0] sm:$0xff]
          %v591 = vld [vmem:[#allocation8 + $0xb8] sm:$0xff]
          %v592 = vld [vmem:[#allocation8 + $0xc0] sm:$0xff]
          %v593 = vld [vmem:[#allocation8 + $0xc8] sm:$0xff]
          %v594 = vld [vmem:[#allocation8 + $0xd0] sm:$0xff]
          %v595 = vld [vmem:[#allocation8 + $0xd8] sm:$0xff]
          %v596 = vld [vmem:[#allocation8 + $0xe0] sm:$0xff]
          %v597 = vld [vmem:[#allocation8 + $0xe8] sm:$0xff]
          %v598 = vld [vmem:[#allocation8 + $0xf0] sm:$0xff]
          %v599 = vld [vmem:[#allocation8 + $0xf8] sm:$0xff]
          %v600 = vld [vmem:[#allocation8 + $0x100] sm:$0xff]
          %v601 = vld [vmem:[#allocation8 + $0x108] sm:$0xff]
          %v602 = vld [vmem:[#allocation8 + $0x110] sm:$0xff]
          %v603 = vld [vmem:[#allocation8 + $0x118] sm:$0xff]
          %v604 = vld [vmem:[#allocation8 + $0x120] sm:$0xff]
          %v605 = vld [vmem:[#allocation8 + $0x128] sm:$0xff]
          %v606 = vld [vmem:[#allocation8 + $0x130] sm:$0xff]
          %v607 = vld [vmem:[#allocation8 + $0x138] sm:$0xff]
          %v608 = vld [vmem:[#allocation8 + $0x140] sm:$0xff]
          %v609 = vld [vmem:[#allocation8 + $0x148] sm:$0xff]
          %v610 = vld [vmem:[#allocation8 + $0x150] sm:$0xff]
          %v611 = vld [vmem:[#allocation8 + $0x158] sm:$0xff]
          %v612 = vld [vmem:[#allocation8 + $0x160] sm:$0xff]
          %v613 = vld [vmem:[#allocation8 + $0x168] sm:$0xff]
          %v614 = vld [vmem:[#allocation8 + $0x170] sm:$0xff]
          %v615 = vld [vmem:[#allocation8 + $0x178] sm:$0xff]
          %v616 = vld [vmem:[#allocation8 + $0x180] sm:$0xff]
          %v617 = vld [vmem:[#allocation8 + $0x188] sm:$0xff]
          %v618 = vld [vmem:[#allocation8 + $0x190] sm:$0xff]
          %v619 = vld [vmem:[#allocation8 + $0x198] sm:$0xff]
          %v620 = vld [vmem:[#allocation8 + $0x1a0] sm:$0xff]
          %v621 = vld [vmem:[#allocation8 + $0x1a8] sm:$0xff]
          %v622 = vld [vmem:[#allocation8 + $0x1b0] sm:$0xff]
          %v623 = vld [vmem:[#allocation8 + $0x1b8] sm:$0xff]
          %v624 = vld [vmem:[#allocation8 + $0x1c0] sm:$0xff]
          %v625 = vld [vmem:[#allocation8 + $0x1c8] sm:$0xff]
          %v626 = vld [vmem:[#allocation8 + $0x1d0] sm:$0xff]
          %v627 = vld [vmem:[#allocation8 + $0x1d8] sm:$0xff]
          %v628 = vld [vmem:[#allocation8 + $0x1e0] sm:$0xff]
          %v629 = vld [vmem:[#allocation8 + $0x1e8] sm:$0xff]
          %v630 = vld [vmem:[#allocation8 + $0x1f0] sm:$0xff]
          %v631 = vld [vmem:[#allocation8 + $0x1f8] sm:$0xff]
          %v632 = vld [vmem:[#allocation8 + $0x200] sm:$0xff]
          %v633 = vld [vmem:[#allocation8 + $0x208] sm:$0xff]
          %v634 = vld [vmem:[#allocation8 + $0x210] sm:$0xff]
          %v635 = vld [vmem:[#allocation8 + $0x218] sm:$0xff]
          %v636 = vld [vmem:[#allocation8 + $0x220] sm:$0xff]
          %v637 = vld [vmem:[#allocation8 + $0x228] sm:$0xff]
          %v638 = vld [vmem:[#allocation8 + $0x230] sm:$0xff]
          %v639 = vld [vmem:[#allocation8 + $0x238] sm:$0xff]
          %v640 = vld [vmem:[#allocation8 + $0x240] sm:$0xff]
          %v641 = vld [vmem:[#allocation8 + $0x248] sm:$0xff]
          %v642 = vld [vmem:[#allocation8 + $0x250] sm:$0xff]
          %v643 = vld [vmem:[#allocation8 + $0x258] sm:$0xff]
          %v644 = vld [vmem:[#allocation8 + $0x260] sm:$0xff]
          %v645 = vld [vmem:[#allocation8 + $0x268] sm:$0xff]
          %v646 = vld [vmem:[#allocation8 + $0x270] sm:$0xff]
          %v647 = vld [vmem:[#allocation8 + $0x278] sm:$0xff]
          %v648 = vld [vmem:[#allocation8 + $0x280] sm:$0xff]
          %v649 = vld [vmem:[#allocation8 + $0x288] sm:$0xff]
          %v650 = vld [vmem:[#allocation8 + $0x290] sm:$0xff]
          %v651 = vld [vmem:[#allocation8 + $0x298] sm:$0xff]
          %v652 = vld [vmem:[#allocation8 + $0x2a0] sm:$0xff]
          %v653 = vld [vmem:[#allocation8 + $0x2a8] sm:$0xff]
          %v654 = vld [vmem:[#allocation8 + $0x2b0] sm:$0xff]
          %v655 = vld [vmem:[#allocation8 + $0x2b8] sm:$0xff]
          %v656 = vld [vmem:[#allocation8 + $0x2c0] sm:$0xff]
          %v657 = vld [vmem:[#allocation8 + $0x2c8] sm:$0xff]
          %v658 = vld [vmem:[#allocation8 + $0x2d0] sm:$0xff]
          %v659 = vld [vmem:[#allocation8 + $0x2d8] sm:$0xff]
          %v660 = vld [vmem:[#allocation8 + $0x2e0] sm:$0xff]
          %v661 = vld [vmem:[#allocation8 + $0x2e8] sm:$0xff]
          %v662 = vld [vmem:[#allocation8 + $0x2f0] sm:$0xff]
          %v663 = vld [vmem:[#allocation8 + $0x2f8] sm:$0xff]
          %v664 = vld [vmem:[#allocation8 + $0x300] sm:$0xff]
          %v665 = vld [vmem:[#allocation8 + $0x308] sm:$0xff]
          %v666 = vld [vmem:[#allocation8 + $0x310] sm:$0xff]
          %v667 = vld [vmem:[#allocation8 + $0x318] sm:$0xff]
          %v668 = vld [vmem:[#allocation8 + $0x320] sm:$0xff]
          %v669 = vld [vmem:[#allocation8 + $0x328] sm:$0xff]
          %v670 = vld [vmem:[#allocation8 + $0x330] sm:$0xff]
          %v671 = vld [vmem:[#allocation8 + $0x338] sm:$0xff]
          %v672 = vld [vmem:[#allocation8 + $0x340] sm:$0xff]
          %v673 = vld [vmem:[#allocation8 + $0x348] sm:$0xff]
          %v674 = vld [vmem:[#allocation8 + $0x350] sm:$0xff]
          %v675 = vld [vmem:[#allocation8 + $0x358] sm:$0xff]
          %v676 = vld [vmem:[#allocation8 + $0x360] sm:$0xff]
          %v677 = vld [vmem:[#allocation8 + $0x368] sm:$0xff]
          %v678 = vld [vmem:[#allocation8 + $0x370] sm:$0xff]
          %v679 = vld [vmem:[#allocation8 + $0x378] sm:$0xff]
          %v680 = vld [vmem:[#allocation8 + $0x380] sm:$0xff]
          %v681 = vld [vmem:[#allocation8 + $0x388] sm:$0xff]
          %v682 = vld [vmem:[#allocation8 + $0x390] sm:$0xff]
          %v683 = vld [vmem:[#allocation8 + $0x398] sm:$0xff]
          %v684 = vld [vmem:[#allocation8 + $0x3a0] sm:$0xff]
          %v685 = vld [vmem:[#allocation8 + $0x3a8] sm:$0xff]
          %v686 = vld [vmem:[#allocation8 + $0x3b0] sm:$0xff]
          %v687 = vld [vmem:[#allocation8 + $0x3b8] sm:$0xff]
          %v688 = vld [vmem:[#allocation8 + $0x3c0] sm:$0xff]
          %v689 = vld [vmem:[#allocation8 + $0x3c8] sm:$0xff]
          %v690 = vld [vmem:[#allocation8 + $0x3d0] sm:$0xff]
          %v691 = vld [vmem:[#allocation8 + $0x3d8] sm:$0xff]
          %v692 = vld [vmem:[#allocation8 + $0x3e0] sm:$0xff]
          %v693 = vld [vmem:[#allocation8 + $0x3e8] sm:$0xff]
          %v694 = vld [vmem:[#allocation8 + $0x3f0] sm:$0xff]
          %v695 = vld [vmem:[#allocation8 + $0x3f8] sm:$0xff]
          %696 = vst [vmem:[#allocation18] sm:$0xff] %v568
          %697 = vst [vmem:[#allocation18 + $0x8] sm:$0xff] %v569
          %698 = vst [vmem:[#allocation18 + $0x10] sm:$0xff] %v570
          %699 = vst [vmem:[#allocation18 + $0x18] sm:$0xff] %v571
          %700 = vst [vmem:[#allocation18 + $0x20] sm:$0xff] %v572
          %701 = vst [vmem:[#allocation18 + $0x28] sm:$0xff] %v573
          %702 = vst [vmem:[#allocation18 + $0x30] sm:$0xff] %v574
          %703 = vst [vmem:[#allocation18 + $0x38] sm:$0xff] %v575
          %704 = vst [vmem:[#allocation18 + $0x40] sm:$0xff] %v576
          %705 = vst [vmem:[#allocation18 + $0x48] sm:$0xff] %v577
          %706 = vst [vmem:[#allocation18 + $0x50] sm:$0xff] %v578
          %707 = vst [vmem:[#allocation18 + $0x58] sm:$0xff] %v579
          %708 = vst [vmem:[#allocation18 + $0x60] sm:$0xff] %v580
          %709 = vst [vmem:[#allocation18 + $0x68] sm:$0xff] %v581
          %710 = vst [vmem:[#allocation18 + $0x70] sm:$0xff] %v582
          %711 = vst [vmem:[#allocation18 + $0x78] sm:$0xff] %v583
          %712 = vst [vmem:[#allocation18 + $0x80] sm:$0xff] %v584
          %713 = vst [vmem:[#allocation18 + $0x88] sm:$0xff] %v585
          %714 = vst [vmem:[#allocation18 + $0x90] sm:$0xff] %v586
          %715 = vst [vmem:[#allocation18 + $0x98] sm:$0xff] %v587
          %716 = vst [vmem:[#allocation18 + $0xa0] sm:$0xff] %v588
          %717 = vst [vmem:[#allocation18 + $0xa8] sm:$0xff] %v589
          %718 = vst [vmem:[#allocation18 + $0xb0] sm:$0xff] %v590
          %719 = vst [vmem:[#allocation18 + $0xb8] sm:$0xff] %v591
          %720 = vst [vmem:[#allocation18 + $0xc0] sm:$0xff] %v592
          %721 = vst [vmem:[#allocation18 + $0xc8] sm:$0xff] %v593
          %722 = vst [vmem:[#allocation18 + $0xd0] sm:$0xff] %v594
          %723 = vst [vmem:[#allocation18 + $0xd8] sm:$0xff] %v595
          %724 = vst [vmem:[#allocation18 + $0xe0] sm:$0xff] %v596
          %725 = vst [vmem:[#allocation18 + $0xe8] sm:$0xff] %v597
          %726 = vst [vmem:[#allocation18 + $0xf0] sm:$0xff] %v598
          %727 = vst [vmem:[#allocation18 + $0xf8] sm:$0xff] %v599
          %728 = vst [vmem:[#allocation18 + $0x100] sm:$0xff] %v600
          %729 = vst [vmem:[#allocation18 + $0x108] sm:$0xff] %v601
          %730 = vst [vmem:[#allocation18 + $0x110] sm:$0xff] %v602
          %731 = vst [vmem:[#allocation18 + $0x118] sm:$0xff] %v603
          %732 = vst [vmem:[#allocation18 + $0x120] sm:$0xff] %v604
          %733 = vst [vmem:[#allocation18 + $0x128] sm:$0xff] %v605
          %734 = vst [vmem:[#allocation18 + $0x130] sm:$0xff] %v606
          %735 = vst [vmem:[#allocation18 + $0x138] sm:$0xff] %v607
          %736 = vst [vmem:[#allocation18 + $0x140] sm:$0xff] %v608
          %737 = vst [vmem:[#allocation18 + $0x148] sm:$0xff] %v609
          %738 = vst [vmem:[#allocation18 + $0x150] sm:$0xff] %v610
          %739 = vst [vmem:[#allocation18 + $0x158] sm:$0xff] %v611
          %740 = vst [vmem:[#allocation18 + $0x160] sm:$0xff] %v612
          %741 = vst [vmem:[#allocation18 + $0x168] sm:$0xff] %v613
          %742 = vst [vmem:[#allocation18 + $0x170] sm:$0xff] %v614
          %743 = vst [vmem:[#allocation18 + $0x178] sm:$0xff] %v615
          %744 = vst [vmem:[#allocation18 + $0x180] sm:$0xff] %v616
          %745 = vst [vmem:[#allocation18 + $0x188] sm:$0xff] %v617
          %746 = vst [vmem:[#allocation18 + $0x190] sm:$0xff] %v618
          %747 = vst [vmem:[#allocation18 + $0x198] sm:$0xff] %v619
          %748 = vst [vmem:[#allocation18 + $0x1a0] sm:$0xff] %v620
          %749 = vst [vmem:[#allocation18 + $0x1a8] sm:$0xff] %v621
          %750 = vst [vmem:[#allocation18 + $0x1b0] sm:$0xff] %v622
          %751 = vst [vmem:[#allocation18 + $0x1b8] sm:$0xff] %v623
          %752 = vst [vmem:[#allocation18 + $0x1c0] sm:$0xff] %v624
          %753 = vst [vmem:[#allocation18 + $0x1c8] sm:$0xff] %v625
          %754 = vst [vmem:[#allocation18 + $0x1d0] sm:$0xff] %v626
          %755 = vst [vmem:[#allocation18 + $0x1d8] sm:$0xff] %v627
          %756 = vst [vmem:[#allocation18 + $0x1e0] sm:$0xff] %v628
          %757 = vst [vmem:[#allocation18 + $0x1e8] sm:$0xff] %v629
          %758 = vst [vmem:[#allocation18 + $0x1f0] sm:$0xff] %v630
          %759 = vst [vmem:[#allocation18 + $0x1f8] sm:$0xff] %v631
          %760 = vst [vmem:[#allocation18 + $0x200] sm:$0xff] %v632
          %761 = vst [vmem:[#allocation18 + $0x208] sm:$0xff] %v633
          %762 = vst [vmem:[#allocation18 + $0x210] sm:$0xff] %v634
          %763 = vst [vmem:[#allocation18 + $0x218] sm:$0xff] %v635
          %764 = vst [vmem:[#allocation18 + $0x220] sm:$0xff] %v636
          %765 = vst [vmem:[#allocation18 + $0x228] sm:$0xff] %v637
          %766 = vst [vmem:[#allocation18 + $0x230] sm:$0xff] %v638
          %767 = vst [vmem:[#allocation18 + $0x238] sm:$0xff] %v639
          %768 = vst [vmem:[#allocation18 + $0x240] sm:$0xff] %v640
          %769 = vst [vmem:[#allocation18 + $0x248] sm:$0xff] %v641
          %770 = vst [vmem:[#allocation18 + $0x250] sm:$0xff] %v642
          %771 = vst [vmem:[#allocation18 + $0x258] sm:$0xff] %v643
          %772 = vst [vmem:[#allocation18 + $0x260] sm:$0xff] %v644
          %773 = vst [vmem:[#allocation18 + $0x268] sm:$0xff] %v645
          %774 = vst [vmem:[#allocation18 + $0x270] sm:$0xff] %v646
          %775 = vst [vmem:[#allocation18 + $0x278] sm:$0xff] %v647
          %776 = vst [vmem:[#allocation18 + $0x280] sm:$0xff] %v648
          %777 = vst [vmem:[#allocation18 + $0x288] sm:$0xff] %v649
          %778 = vst [vmem:[#allocation18 + $0x290] sm:$0xff] %v650
          %779 = vst [vmem:[#allocation18 + $0x298] sm:$0xff] %v651
          %780 = vst [vmem:[#allocation18 + $0x2a0] sm:$0xff] %v652
          %781 = vst [vmem:[#allocation18 + $0x2a8] sm:$0xff] %v653
          %782 = vst [vmem:[#allocation18 + $0x2b0] sm:$0xff] %v654
          %783 = vst [vmem:[#allocation18 + $0x2b8] sm:$0xff] %v655
          %784 = vst [vmem:[#allocation18 + $0x2c0] sm:$0xff] %v656
          %785 = vst [vmem:[#allocation18 + $0x2c8] sm:$0xff] %v657
          %786 = vst [vmem:[#allocation18 + $0x2d0] sm:$0xff] %v658
          %787 = vst [vmem:[#allocation18 + $0x2d8] sm:$0xff] %v659
          %788 = vst [vmem:[#allocation18 + $0x2e0] sm:$0xff] %v660
          %789 = vst [vmem:[#allocation18 + $0x2e8] sm:$0xff] %v661
          %790 = vst [vmem:[#allocation18 + $0x2f0] sm:$0xff] %v662
          %791 = vst [vmem:[#allocation18 + $0x2f8] sm:$0xff] %v663
          %792 = vst [vmem:[#allocation18 + $0x300] sm:$0xff] %v664
          %793 = vst [vmem:[#allocation18 + $0x308] sm:$0xff] %v665
          %794 = vst [vmem:[#allocation18 + $0x310] sm:$0xff] %v666
          %795 = vst [vmem:[#allocation18 + $0x318] sm:$0xff] %v667
          %796 = vst [vmem:[#allocation18 + $0x320] sm:$0xff] %v668
          %797 = vst [vmem:[#allocation18 + $0x328] sm:$0xff] %v669
          %798 = vst [vmem:[#allocation18 + $0x330] sm:$0xff] %v670
          %799 = vst [vmem:[#allocation18 + $0x338] sm:$0xff] %v671
          %800 = vst [vmem:[#allocation18 + $0x340] sm:$0xff] %v672
          %801 = vst [vmem:[#allocation18 + $0x348] sm:$0xff] %v673
          %802 = vst [vmem:[#allocation18 + $0x350] sm:$0xff] %v674
          %803 = vst [vmem:[#allocation18 + $0x358] sm:$0xff] %v675
          %804 = vst [vmem:[#allocation18 + $0x360] sm:$0xff] %v676
          %805 = vst [vmem:[#allocation18 + $0x368] sm:$0xff] %v677
          %806 = vst [vmem:[#allocation18 + $0x370] sm:$0xff] %v678
          %807 = vst [vmem:[#allocation18 + $0x378] sm:$0xff] %v679
          %808 = vst [vmem:[#allocation18 + $0x380] sm:$0xff] %v680
          %809 = vst [vmem:[#allocation18 + $0x388] sm:$0xff] %v681
          %810 = vst [vmem:[#allocation18 + $0x390] sm:$0xff] %v682
          %811 = vst [vmem:[#allocation18 + $0x398] sm:$0xff] %v683
          %812 = vst [vmem:[#allocation18 + $0x3a0] sm:$0xff] %v684
          %813 = vst [vmem:[#allocation18 + $0x3a8] sm:$0xff] %v685
          %814 = vst [vmem:[#allocation18 + $0x3b0] sm:$0xff] %v686
          %815 = vst [vmem:[#allocation18 + $0x3b8] sm:$0xff] %v687
          %816 = vst [vmem:[#allocation18 + $0x3c0] sm:$0xff] %v688
          %817 = vst [vmem:[#allocation18 + $0x3c8] sm:$0xff] %v689
          %818 = vst [vmem:[#allocation18 + $0x3d0] sm:$0xff] %v690
          %819 = vst [vmem:[#allocation18 + $0x3d8] sm:$0xff] %v691
          %820 = vst [vmem:[#allocation18 + $0x3e0] sm:$0xff] %v692
          %821 = vst [vmem:[#allocation18 + $0x3e8] sm:$0xff] %v693
          %822 = vst [vmem:[#allocation18 + $0x3f0] sm:$0xff] %v694
          %823 = vst [vmem:[#allocation18 + $0x3f8] sm:$0xff] %v695
        $region88: #{tpu_custom_call.1} parent=55 // pred_fallthru
          _
        %v824 = vld [vmem:[%s494] sm:$0xff]
        %v825 = vpack.c.bf16 %v824, %v824
        %v826 = vld [vmem:[#allocation10] sm:$0xff]
        %v827 = vld [vmem:[#allocation10 + $0x8] sm:$0xff]
        %v828 = vld [vmem:[#allocation10 + $0x10] sm:$0xff]
        %v829 = vld [vmem:[#allocation10 + $0x18] sm:$0xff]
        %v830 = vld [vmem:[#allocation10 + $0x20] sm:$0xff]
        %v831 = vld [vmem:[#allocation10 + $0x28] sm:$0xff]
        %v832 = vld [vmem:[#allocation10 + $0x30] sm:$0xff]
        %v833 = vld [vmem:[#allocation10 + $0x38] sm:$0xff]
        %v834 = vld [vmem:[#allocation10 + $0x40] sm:$0xff]
        %v835 = vld [vmem:[#allocation10 + $0x48] sm:$0xff]
        %v836 = vld [vmem:[#allocation10 + $0x50] sm:$0xff]
        %v837 = vld [vmem:[#allocation10 + $0x58] sm:$0xff]
        %v838 = vld [vmem:[#allocation10 + $0x60] sm:$0xff]
        %v839 = vld [vmem:[#allocation10 + $0x68] sm:$0xff]
        %v840 = vld [vmem:[#allocation10 + $0x70] sm:$0xff]
        %v841 = vld [vmem:[#allocation10 + $0x78] sm:$0xff]
        %v842 = vld [vmem:[#allocation10 + $0x80] sm:$0xff]
        %v843 = vld [vmem:[#allocation10 + $0x88] sm:$0xff]
        %v844 = vld [vmem:[#allocation10 + $0x90] sm:$0xff]
        %v845 = vld [vmem:[#allocation10 + $0x98] sm:$0xff]
        %v846 = vld [vmem:[#allocation10 + $0xa0] sm:$0xff]
        %v847 = vld [vmem:[#allocation10 + $0xa8] sm:$0xff]
        %v848 = vld [vmem:[#allocation10 + $0xb0] sm:$0xff]
        %v849 = vld [vmem:[#allocation10 + $0xb8] sm:$0xff]
        %v850 = vld [vmem:[#allocation10 + $0xc0] sm:$0xff]
        %v851 = vld [vmem:[#allocation10 + $0xc8] sm:$0xff]
        %v852 = vld [vmem:[#allocation10 + $0xd0] sm:$0xff]
        %v853 = vld [vmem:[#allocation10 + $0xd8] sm:$0xff]
        %v854 = vld [vmem:[#allocation10 + $0xe0] sm:$0xff]
        %v855 = vld [vmem:[#allocation10 + $0xe8] sm:$0xff]
        %v856 = vld [vmem:[#allocation10 + $0xf0] sm:$0xff]
        %v857 = vld [vmem:[#allocation10 + $0xf8] sm:$0xff]
        %v858 = vld [vmem:[#allocation15] sm:$0xff]
        %v859 = vpack.c.bf16 %v858, %v858
        %v860 = vld [vmem:[#allocation11] sm:$0xff]
        %v861 = vld [vmem:[#allocation11 + $0x8] sm:$0xff]
        %v862 = vld [vmem:[#allocation11 + $0x10] sm:$0xff]
        %v863 = vld [vmem:[#allocation11 + $0x18] sm:$0xff]
        %v864 = vld [vmem:[#allocation11 + $0x20] sm:$0xff]
        %v865 = vld [vmem:[#allocation11 + $0x28] sm:$0xff]
        %v866 = vld [vmem:[#allocation11 + $0x30] sm:$0xff]
        %v867 = vld [vmem:[#allocation11 + $0x38] sm:$0xff]
        %v868 = vld [vmem:[#allocation11 + $0x40] sm:$0xff]
        %v869 = vld [vmem:[#allocation11 + $0x48] sm:$0xff]
        %v870 = vld [vmem:[#allocation11 + $0x50] sm:$0xff]
        %v871 = vld [vmem:[#allocation11 + $0x58] sm:$0xff]
        %v872 = vld [vmem:[#allocation11 + $0x60] sm:$0xff]
        %v873 = vld [vmem:[#allocation11 + $0x68] sm:$0xff]
        %v874 = vld [vmem:[#allocation11 + $0x70] sm:$0xff]
        %v875 = vld [vmem:[#allocation11 + $0x78] sm:$0xff]
        %v876 = vld [vmem:[#allocation11 + $0x80] sm:$0xff]
        %v877 = vld [vmem:[#allocation11 + $0x88] sm:$0xff]
        %v878 = vld [vmem:[#allocation11 + $0x90] sm:$0xff]
        %v879 = vld [vmem:[#allocation11 + $0x98] sm:$0xff]
        %v880 = vld [vmem:[#allocation11 + $0xa0] sm:$0xff]
        %v881 = vld [vmem:[#allocation11 + $0xa8] sm:$0xff]
        %v882 = vld [vmem:[#allocation11 + $0xb0] sm:$0xff]
        %v883 = vld [vmem:[#allocation11 + $0xb8] sm:$0xff]
        %v884 = vld [vmem:[#allocation11 + $0xc0] sm:$0xff]
        %v885 = vld [vmem:[#allocation11 + $0xc8] sm:$0xff]
        %v886 = vld [vmem:[#allocation11 + $0xd0] sm:$0xff]
        %v887 = vld [vmem:[#allocation11 + $0xd8] sm:$0xff]
        %v888 = vld [vmem:[#allocation11 + $0xe0] sm:$0xff]
        %v889 = vld [vmem:[#allocation11 + $0xe8] sm:$0xff]
        %v890 = vld [vmem:[#allocation11 + $0xf0] sm:$0xff]
        %v891 = vld [vmem:[#allocation11 + $0xf8] sm:$0xff]
        %v924 = vunpack.c.l.b16 %v860
        %v925 = vunpack.c.h.b16 %v860
        %v926 = vunpack.c.l.b16 %v861
        %v927 = vunpack.c.h.b16 %v861
        %v928 = vunpack.c.l.b16 %v862
        %v929 = vunpack.c.h.b16 %v862
        %v930 = vunpack.c.l.b16 %v863
        %v931 = vunpack.c.h.b16 %v863
        %v932 = vunpack.c.l.b16 %v864
        %v933 = vunpack.c.h.b16 %v864
        %v934 = vunpack.c.l.b16 %v865
        %v935 = vunpack.c.h.b16 %v865
        %v936 = vunpack.c.l.b16 %v866
        %v937 = vunpack.c.h.b16 %v866
        %v938 = vunpack.c.l.b16 %v867
        %v939 = vunpack.c.h.b16 %v867
        %v940 = vunpack.c.l.b16 %v868
        %v941 = vunpack.c.h.b16 %v868
        %v942 = vunpack.c.l.b16 %v869
        %v943 = vunpack.c.h.b16 %v869
        %v944 = vunpack.c.l.b16 %v870
        %v945 = vunpack.c.h.b16 %v870
        %v946 = vunpack.c.l.b16 %v871
        %v947 = vunpack.c.h.b16 %v871
        %v948 = vunpack.c.l.b16 %v872
        %v949 = vunpack.c.h.b16 %v872
        %v950 = vunpack.c.l.b16 %v873
        %v951 = vunpack.c.h.b16 %v873
        %v952 = vunpack.c.l.b16 %v874
        %v953 = vunpack.c.h.b16 %v874
        %v954 = vunpack.c.l.b16 %v875
        %v955 = vunpack.c.h.b16 %v875
        %v956 = vunpack.c.l.b16 %v876
        %v957 = vunpack.c.h.b16 %v876
        %v958 = vunpack.c.l.b16 %v877
        %v959 = vunpack.c.h.b16 %v877
        %v960 = vunpack.c.l.b16 %v878
        %v961 = vunpack.c.h.b16 %v878
        %v962 = vunpack.c.l.b16 %v879
        %v963 = vunpack.c.h.b16 %v879
        %v964 = vunpack.c.l.b16 %v880
        %v965 = vunpack.c.h.b16 %v880
        %v966 = vunpack.c.l.b16 %v881
        %v967 = vunpack.c.h.b16 %v881
        %v968 = vunpack.c.l.b16 %v882
        %v969 = vunpack.c.h.b16 %v882
        %v970 = vunpack.c.l.b16 %v883
        %v971 = vunpack.c.h.b16 %v883
        %v972 = vunpack.c.l.b16 %v884
        %v973 = vunpack.c.h.b16 %v884
        %v974 = vunpack.c.l.b16 %v885
        %v975 = vunpack.c.h.b16 %v885
        %v976 = vunpack.c.l.b16 %v886
        %v977 = vunpack.c.h.b16 %v886
        %v978 = vunpack.c.l.b16 %v887
        %v979 = vunpack.c.h.b16 %v887
        %v980 = vunpack.c.l.b16 %v888
        %v981 = vunpack.c.h.b16 %v888
        %v982 = vunpack.c.l.b16 %v889
        %v983 = vunpack.c.h.b16 %v889
        %v984 = vunpack.c.l.b16 %v890
        %v985 = vunpack.c.h.b16 %v890
        %v986 = vunpack.c.l.b16 %v891
        %v987 = vunpack.c.h.b16 %v891
        %v988 = vpack.c.b16 %v928, %v924
        %v989 = vpack.c.b16 %v929, %v925
        %v990 = vpack.c.b16 %v930, %v926
        %v991 = vpack.c.b16 %v931, %v927
        %v992 = vpack.c.b16 %v936, %v932
        %v993 = vpack.c.b16 %v937, %v933
        %v994 = vpack.c.b16 %v938, %v934
        %v995 = vpack.c.b16 %v939, %v935
        %v996 = vpack.c.b16 %v944, %v940
        %v997 = vpack.c.b16 %v945, %v941
        %v998 = vpack.c.b16 %v946, %v942
        %v999 = vpack.c.b16 %v947, %v943
        %v1000 = vpack.c.b16 %v952, %v948
        %v1001 = vpack.c.b16 %v953, %v949
        %v1002 = vpack.c.b16 %v954, %v950
        %v1003 = vpack.c.b16 %v955, %v951
        %v1004 = vpack.c.b16 %v960, %v956
        %v1005 = vpack.c.b16 %v961, %v957
        %v1006 = vpack.c.b16 %v962, %v958
        %v1007 = vpack.c.b16 %v963, %v959
        %v1008 = vpack.c.b16 %v968, %v964
        %v1009 = vpack.c.b16 %v969, %v965
        %v1010 = vpack.c.b16 %v970, %v966
        %v1011 = vpack.c.b16 %v971, %v967
        %v1012 = vpack.c.b16 %v976, %v972
        %v1013 = vpack.c.b16 %v977, %v973
        %v1014 = vpack.c.b16 %v978, %v974
        %v1015 = vpack.c.b16 %v979, %v975
        %v1016 = vpack.c.b16 %v984, %v980
        %v1017 = vpack.c.b16 %v985, %v981
        %v1018 = vpack.c.b16 %v986, %v982
        %v1019 = vpack.c.b16 %v987, %v983
        %1052 = vmatprep.subr.bf16.mxu0 %v989
        %1053 = vmatpush1.bf16.msra.mxu0 %v988
        %1054 = vmatprep.subr.bf16.mxu0 %v993
        %1055 = vmatpush1.bf16.msra.mxu0 %v992
        %1056 = vmatprep.subr.bf16.mxu0 %v997
        %1057 = vmatpush1.bf16.msra.mxu0 %v996
        %1058 = vmatprep.subr.bf16.mxu0 %v1001
        %1059 = vmatpush1.bf16.msra.mxu0 %v1000
        %1060 = vmatprep.subr.bf16.mxu0 %v1005
        %1061 = vmatpush1.bf16.msra.mxu0 %v1004
        %1062 = vmatprep.subr.bf16.mxu0 %v1009
        %1063 = vmatpush1.bf16.msra.mxu0 %v1008
        %1064 = vmatprep.subr.bf16.mxu0 %v1013
        %1065 = vmatpush1.bf16.msra.mxu0 %v1012
        %1066 = vmatprep.subr.bf16.mxu0 %v1017
        %1067 = vmatpush1.bf16.msra.mxu0 %v1016
        %1068 = vmatprep.subr.bf16.mxu0 0
        %1069 = vmatpush1.bf16.msra.mxu0 0
        %1070 = vmatprep.subr.bf16.mxu0 0
        %1071 = vmatpush1.bf16.msra.mxu0 0
        %1072 = vmatprep.subr.bf16.mxu0 0
        %1073 = vmatpush1.bf16.msra.mxu0 0
        %1074 = vmatprep.subr.bf16.mxu0 0
        %1075 = vmatpush1.bf16.msra.mxu0 0
        %1076 = vmatprep.subr.bf16.mxu0 0
        %1077 = vmatpush1.bf16.msra.mxu0 0
        %1078 = vmatprep.subr.bf16.mxu0 0
        %1079 = vmatpush1.bf16.msra.mxu0 0
        %1080 = vmatprep.subr.bf16.mxu0 0
        %1081 = vmatpush1.bf16.msra.mxu0 0
        %1082 = vmatprep.subr.bf16.mxu0 0
        %1083 = vmatpush1.bf16.msra.mxu0 0
        %1084 = vmatprep.mubr.bf16.mxu0 0
        %1085 = vmatmul.mubr.bf16.gmra.mrb[0].mxu0 %v859
        %v1086 = vpop.f32.mrb[0].mxu0
        %v1087 = vadd.f32 0.0, %v1086
        %v1088 = vpop.f32.mrb[0].mxu0
        %v1089 = vadd.f32 0.0, %v1088
        %v1090 = vpop.f32.mrb[0].mxu0
        %v1091 = vpop.f32.mrb[0].mxu0
        %1092 = vdwg.mxu0
        %1093 = vmatprep.subr.bf16.mxu0 %v991
        %1094 = vmatpush1.bf16.msra.mxu0 %v990
        %1095 = vmatprep.subr.bf16.mxu0 %v995
        %1096 = vmatpush1.bf16.msra.mxu0 %v994
        %1097 = vmatprep.subr.bf16.mxu0 %v999
        %1098 = vmatpush1.bf16.msra.mxu0 %v998
        %1099 = vmatprep.subr.bf16.mxu0 %v1003
        %1100 = vmatpush1.bf16.msra.mxu0 %v1002
        %1101 = vmatprep.subr.bf16.mxu0 %v1007
        %1102 = vmatpush1.bf16.msra.mxu0 %v1006
        %1103 = vmatprep.subr.bf16.mxu0 %v1011
        %1104 = vmatpush1.bf16.msra.mxu0 %v1010
        %1105 = vmatprep.subr.bf16.mxu0 %v1015
        %1106 = vmatpush1.bf16.msra.mxu0 %v1014
        %1107 = vmatprep.subr.bf16.mxu0 %v1019
        %1108 = vmatpush1.bf16.msra.mxu0 %v1018
        %1109 = vmatprep.subr.bf16.mxu0 0
        %1110 = vmatpush1.bf16.msra.mxu0 0
        %1111 = vmatprep.subr.bf16.mxu0 0
        %1112 = vmatpush1.bf16.msra.mxu0 0
        %1113 = vmatprep.subr.bf16.mxu0 0
        %1114 = vmatpush1.bf16.msra.mxu0 0
        %1115 = vmatprep.subr.bf16.mxu0 0
        %1116 = vmatpush1.bf16.msra.mxu0 0
        %1117 = vmatprep.subr.bf16.mxu0 0
        %1118 = vmatpush1.bf16.msra.mxu0 0
        %1119 = vmatprep.subr.bf16.mxu0 0
        %1120 = vmatpush1.bf16.msra.mxu0 0
        %1121 = vmatprep.subr.bf16.mxu0 0
        %1122 = vmatpush1.bf16.msra.mxu0 0
        %1123 = vmatprep.subr.bf16.mxu0 0
        %1124 = vmatpush1.bf16.msra.mxu0 0
        %1125 = vmatprep.mubr.bf16.mxu0 0
        %1126 = vmatmul.mubr.bf16.gmra.mrb[0].mxu0 %v859
        %v1127 = vpop.f32.mrb[0].mxu0
        %v1128 = vadd.f32 0.0, %v1127
        %v1129 = vpop.f32.mrb[0].mxu0
        %v1130 = vadd.f32 0.0, %v1129
        %v1131 = vpop.f32.mrb[0].mxu0
        %v1132 = vpop.f32.mrb[0].mxu0
        %1133 = vdwg.mxu0
        %v1166 = vunpack.c.l.b16 %v826
        %v1167 = vunpack.c.h.b16 %v826
        %v1168 = vunpack.c.l.b16 %v827
        %v1169 = vunpack.c.h.b16 %v827
        %v1170 = vunpack.c.l.b16 %v828
        %v1171 = vunpack.c.h.b16 %v828
        %v1172 = vunpack.c.l.b16 %v829
        %v1173 = vunpack.c.h.b16 %v829
        %v1174 = vunpack.c.l.b16 %v830
        %v1175 = vunpack.c.h.b16 %v830
        %v1176 = vunpack.c.l.b16 %v831
        %v1177 = vunpack.c.h.b16 %v831
        %v1178 = vunpack.c.l.b16 %v832
        %v1179 = vunpack.c.h.b16 %v832
        %v1180 = vunpack.c.l.b16 %v833
        %v1181 = vunpack.c.h.b16 %v833
        %v1182 = vunpack.c.l.b16 %v834
        %v1183 = vunpack.c.h.b16 %v834
        %v1184 = vunpack.c.l.b16 %v835
        %v1185 = vunpack.c.h.b16 %v835
        %v1186 = vunpack.c.l.b16 %v836
        %v1187 = vunpack.c.h.b16 %v836
        %v1188 = vunpack.c.l.b16 %v837
        %v1189 = vunpack.c.h.b16 %v837
        %v1190 = vunpack.c.l.b16 %v838
        %v1191 = vunpack.c.h.b16 %v838
        %v1192 = vunpack.c.l.b16 %v839
        %v1193 = vunpack.c.h.b16 %v839
        %v1194 = vunpack.c.l.b16 %v840
        %v1195 = vunpack.c.h.b16 %v840
        %v1196 = vunpack.c.l.b16 %v841
        %v1197 = vunpack.c.h.b16 %v841
        %v1198 = vunpack.c.l.b16 %v842
        %v1199 = vunpack.c.h.b16 %v842
        %v1200 = vunpack.c.l.b16 %v843
        %v1201 = vunpack.c.h.b16 %v843
        %v1202 = vunpack.c.l.b16 %v844
        %v1203 = vunpack.c.h.b16 %v844
        %v1204 = vunpack.c.l.b16 %v845
        %v1205 = vunpack.c.h.b16 %v845
        %v1206 = vunpack.c.l.b16 %v846
        %v1207 = vunpack.c.h.b16 %v846
        %v1208 = vunpack.c.l.b16 %v847
        %v1209 = vunpack.c.h.b16 %v847
        %v1210 = vunpack.c.l.b16 %v848
        %v1211 = vunpack.c.h.b16 %v848
        %v1212 = vunpack.c.l.b16 %v849
        %v1213 = vunpack.c.h.b16 %v849
        %v1214 = vunpack.c.l.b16 %v850
        %v1215 = vunpack.c.h.b16 %v850
        %v1216 = vunpack.c.l.b16 %v851
        %v1217 = vunpack.c.h.b16 %v851
        %v1218 = vunpack.c.l.b16 %v852
        %v1219 = vunpack.c.h.b16 %v852
        %v1220 = vunpack.c.l.b16 %v853
        %v1221 = vunpack.c.h.b16 %v853
        %v1222 = vunpack.c.l.b16 %v854
        %v1223 = vunpack.c.h.b16 %v854
        %v1224 = vunpack.c.l.b16 %v855
        %v1225 = vunpack.c.h.b16 %v855
        %v1226 = vunpack.c.l.b16 %v856
        %v1227 = vunpack.c.h.b16 %v856
        %v1228 = vunpack.c.l.b16 %v857
        %v1229 = vunpack.c.h.b16 %v857
        %v1230 = vpack.c.b16 %v1170, %v1166
        %v1231 = vpack.c.b16 %v1171, %v1167
        %v1232 = vpack.c.b16 %v1172, %v1168
        %v1233 = vpack.c.b16 %v1173, %v1169
        %v1234 = vpack.c.b16 %v1178, %v1174
        %v1235 = vpack.c.b16 %v1179, %v1175
        %v1236 = vpack.c.b16 %v1180, %v1176
        %v1237 = vpack.c.b16 %v1181, %v1177
        %v1238 = vpack.c.b16 %v1186, %v1182
        %v1239 = vpack.c.b16 %v1187, %v1183
        %v1240 = vpack.c.b16 %v1188, %v1184
        %v1241 = vpack.c.b16 %v1189, %v1185
        %v1242 = vpack.c.b16 %v1194, %v1190
        %v1243 = vpack.c.b16 %v1195, %v1191
        %v1244 = vpack.c.b16 %v1196, %v1192
        %v1245 = vpack.c.b16 %v1197, %v1193
        %v1246 = vpack.c.b16 %v1202, %v1198
        %v1247 = vpack.c.b16 %v1203, %v1199
        %v1248 = vpack.c.b16 %v1204, %v1200
        %v1249 = vpack.c.b16 %v1205, %v1201
        %v1250 = vpack.c.b16 %v1210, %v1206
        %v1251 = vpack.c.b16 %v1211, %v1207
        %v1252 = vpack.c.b16 %v1212, %v1208
        %v1253 = vpack.c.b16 %v1213, %v1209
        %v1254 = vpack.c.b16 %v1218, %v1214
        %v1255 = vpack.c.b16 %v1219, %v1215
        %v1256 = vpack.c.b16 %v1220, %v1216
        %v1257 = vpack.c.b16 %v1221, %v1217
        %v1258 = vpack.c.b16 %v1226, %v1222
        %v1259 = vpack.c.b16 %v1227, %v1223
        %v1260 = vpack.c.b16 %v1228, %v1224
        %v1261 = vpack.c.b16 %v1229, %v1225
        %1294 = vmatprep.subr.bf16.mxu0 %v1231
        %1295 = vmatpush1.bf16.msra.mxu0 %v1230
        %1296 = vmatprep.subr.bf16.mxu0 %v1235
        %1297 = vmatpush1.bf16.msra.mxu0 %v1234
        %1298 = vmatprep.subr.bf16.mxu0 %v1239
        %1299 = vmatpush1.bf16.msra.mxu0 %v1238
        %1300 = vmatprep.subr.bf16.mxu0 %v1243
        %1301 = vmatpush1.bf16.msra.mxu0 %v1242
        %1302 = vmatprep.subr.bf16.mxu0 %v1247
        %1303 = vmatpush1.bf16.msra.mxu0 %v1246
        %1304 = vmatprep.subr.bf16.mxu0 %v1251
        %1305 = vmatpush1.bf16.msra.mxu0 %v1250
        %1306 = vmatprep.subr.bf16.mxu0 %v1255
        %1307 = vmatpush1.bf16.msra.mxu0 %v1254
        %1308 = vmatprep.subr.bf16.mxu0 %v1259
        %1309 = vmatpush1.bf16.msra.mxu0 %v1258
        %1310 = vmatprep.subr.bf16.mxu0 0
        %1311 = vmatpush1.bf16.msra.mxu0 0
        %1312 = vmatprep.subr.bf16.mxu0 0
        %1313 = vmatpush1.bf16.msra.mxu0 0
        %1314 = vmatprep.subr.bf16.mxu0 0
        %1315 = vmatpush1.bf16.msra.mxu0 0
        %1316 = vmatprep.subr.bf16.mxu0 0
        %1317 = vmatpush1.bf16.msra.mxu0 0
        %1318 = vmatprep.subr.bf16.mxu0 0
        %1319 = vmatpush1.bf16.msra.mxu0 0
        %1320 = vmatprep.subr.bf16.mxu0 0
        %1321 = vmatpush1.bf16.msra.mxu0 0
        %1322 = vmatprep.subr.bf16.mxu0 0
        %1323 = vmatpush1.bf16.msra.mxu0 0
        %1324 = vmatprep.subr.bf16.mxu0 0
        %1325 = vmatpush1.bf16.msra.mxu0 0
        %1326 = vmatprep.mubr.bf16.mxu0 0
        %1327 = vmatmul.mubr.bf16.gmra.mrb[0].mxu0 %v825
        %v1328 = vpop.f32.mrb[0].mxu0
        %v1329 = vadd.f32 %v1087, %v1328
        %v1330 = vpop.f32.mrb[0].mxu0
        %v1331 = vadd.f32 %v1089, %v1330
        %v1332 = vpop.f32.mrb[0].mxu0
        %v1333 = vpop.f32.mrb[0].mxu0
        %1334 = vdwg.mxu0
        %1335 = vmatprep.subr.bf16.mxu0 %v1233
        %1336 = vmatpush1.bf16.msra.mxu0 %v1232
        %1337 = vmatprep.subr.bf16.mxu0 %v1237
        %1338 = vmatpush1.bf16.msra.mxu0 %v1236
        %1339 = vmatprep.subr.bf16.mxu0 %v1241
        %1340 = vmatpush1.bf16.msra.mxu0 %v1240
        %1341 = vmatprep.subr.bf16.mxu0 %v1245
        %1342 = vmatpush1.bf16.msra.mxu0 %v1244
        %1343 = vmatprep.subr.bf16.mxu0 %v1249
        %1344 = vmatpush1.bf16.msra.mxu0 %v1248
        %1345 = vmatprep.subr.bf16.mxu0 %v1253
        %1346 = vmatpush1.bf16.msra.mxu0 %v1252
        %1347 = vmatprep.subr.bf16.mxu0 %v1257
        %1348 = vmatpush1.bf16.msra.mxu0 %v1256
        %1349 = vmatprep.subr.bf16.mxu0 %v1261
        %1350 = vmatpush1.bf16.msra.mxu0 %v1260
        %1351 = vmatprep.subr.bf16.mxu0 0
        %1352 = vmatpush1.bf16.msra.mxu0 0
        %1353 = vmatprep.subr.bf16.mxu0 0
        %1354 = vmatpush1.bf16.msra.mxu0 0
        %1355 = vmatprep.subr.bf16.mxu0 0
        %1356 = vmatpush1.bf16.msra.mxu0 0
        %1357 = vmatprep.subr.bf16.mxu0 0
        %1358 = vmatpush1.bf16.msra.mxu0 0
        %1359 = vmatprep.subr.bf16.mxu0 0
        %1360 = vmatpush1.bf16.msra.mxu0 0
        %1361 = vmatprep.subr.bf16.mxu0 0
        %1362 = vmatpush1.bf16.msra.mxu0 0
        %1363 = vmatprep.subr.bf16.mxu0 0
        %1364 = vmatpush1.bf16.msra.mxu0 0
        %1365 = vmatprep.subr.bf16.mxu0 0
        %1366 = vmatpush1.bf16.msra.mxu0 0
        %1367 = vmatprep.mubr.bf16.mxu0 0
        %1368 = vmatmul.mubr.bf16.gmra.mrb[0].mxu0 %v825
        %v1369 = vpop.f32.mrb[0].mxu0
        %v1370 = vadd.f32 %v1128, %v1369
        %v1371 = vpop.f32.mrb[0].mxu0
        %v1372 = vadd.f32 %v1130, %v1371
        %v1373 = vpop.f32.mrb[0].mxu0
        %v1374 = vpop.f32.mrb[0].mxu0
        %1375 = vdwg.mxu0
        %v1376 = vld [vmem:[%s6] sm:$0xf]
        %v1378 = vlaneseq
        %v1379 = vshrl.u32 %v1378, 7
        %v1380 = vsub.s32 0, %v1379
        %v1381 = vrot.slane %v1376, %v1380
        %v1382 = vlaneseq
        %v1383 = vshrl.u32 %v1382, 7
        %v1384 = vsub.s32 1, %v1383
        %v1385 = vrot.slane %v1376, %v1384
        %v1386 = vlaneseq
        %v1387 = vshrl.u32 %v1386, 7
        %v1388 = vsub.s32 2, %v1387
        %v1389 = vrot.slane %v1376, %v1388
        %v1390 = vlaneseq
        %v1391 = vshrl.u32 %v1390, 7
        %v1392 = vsub.s32 3, %v1391
        %v1393 = vrot.slane %v1376, %v1392
        %v1398 = vadd.f32 %v1329, %v1381
        %v1399 = vadd.f32 %v1331, %v1385
        %v1400 = vadd.f32 %v1370, %v1389
        %v1401 = vadd.f32 %v1372, %v1393
        %v1402 = vmul.f32 %v1398, 0.5
        %v1403 = vtanh.pop %v1402
        %v1404 = vmul.f32 %v1403, 0.5
        %v1405 = vadd.f32 %v1404, 0.5
        %v1406 = vmul.f32 %v1399, 0.5
        %v1407 = vtanh.pop %v1406
        %v1408 = vmul.f32 %v1407, 0.5
        %v1409 = vadd.f32 %v1408, 0.5
        %v1410 = vtanh.pop %v1400
        %v1411 = vmul.f32 %v1401, 0.5
        %v1412 = vtanh.pop %v1411
        %v1413 = vmul.f32 %v1412, 0.5
        %v1414 = vadd.f32 %v1413, 0.5
        %v1415 = vld [vmem:[#allocation17] sm:$0xff]
        %v1416 = vmul.f32 %v1409, %v1415
        %v1417 = vmul.f32 %v1405, %v1410
        %v1418 = vadd.f32 %v1416, %v1417
        %v1419 = vtanh.pop %v1418
        %v1420 = vmul.f32 %v1414, %v1419
        %1421 = vst [vmem:[#allocation15] sm:$0xff] %v1420
        %1422 = vst [vmem:[#allocation17] sm:$0xff] %v1418
        %v1423 = vpack.c.bf16 %v1420, %v1420
        %v1424 = vld [vmem:[#allocation13] sm:$0xf]
        %v1425 = vld [vmem:[#allocation13 + $0x4] sm:$0xf]
        %v1426 = vld [vmem:[#allocation13 + $0x8] sm:$0xf]
        %v1427 = vld [vmem:[#allocation13 + $0xc] sm:$0xf]
        %v1428 = vld [vmem:[#allocation13 + $0x10] sm:$0xf]
        %v1429 = vld [vmem:[#allocation13 + $0x14] sm:$0xf]
        %v1430 = vld [vmem:[#allocation13 + $0x18] sm:$0xf]
        %v1431 = vld [vmem:[#allocation13 + $0x1c] sm:$0xf]
        %v1432 = vld [vmem:[#allocation13 + $0x20] sm:$0xf]
        %v1433 = vld [vmem:[#allocation13 + $0x24] sm:$0xf]
        %v1434 = vld [vmem:[#allocation13 + $0x28] sm:$0xf]
        %v1435 = vld [vmem:[#allocation13 + $0x2c] sm:$0xf]
        %v1436 = vld [vmem:[#allocation13 + $0x30] sm:$0xf]
        %v1437 = vld [vmem:[#allocation13 + $0x34] sm:$0xf]
        %v1438 = vld [vmem:[#allocation13 + $0x38] sm:$0xf]
        %v1439 = vld [vmem:[#allocation13 + $0x3c] sm:$0xf]
        %v1440 = vld [vmem:[%s8] sm:$0x1]
        %v1442 = vlaneseq
        %v1443 = vshrl.u32 %v1442, 7
        %v1444 = vsub.s32 0, %v1443
        %v1445 = vrot.slane %v1440, %v1444
        %v1463 = vunpack.c.l.b16 %v1424
        %v1464 = vunpack.c.l.b16 %v1425
        %v1465 = vunpack.c.l.b16 %v1426
        %v1466 = vunpack.c.l.b16 %v1427
        %v1467 = vunpack.c.l.b16 %v1428
        %v1468 = vunpack.c.l.b16 %v1429
        %v1469 = vunpack.c.l.b16 %v1430
        %v1470 = vunpack.c.l.b16 %v1431
        %v1471 = vunpack.c.l.b16 %v1432
        %v1472 = vunpack.c.l.b16 %v1433
        %v1473 = vunpack.c.l.b16 %v1434
        %v1474 = vunpack.c.l.b16 %v1435
        %v1475 = vunpack.c.l.b16 %v1436
        %v1476 = vunpack.c.l.b16 %v1437
        %v1477 = vunpack.c.l.b16 %v1438
        %v1478 = vunpack.c.l.b16 %v1439
        %v1479 = vpack.c.b16 %v1464, %v1463
        %v1480 = vpack.c.b16 %v1466, %v1465
        %v1481 = vpack.c.b16 %v1468, %v1467
        %v1482 = vpack.c.b16 %v1470, %v1469
        %v1483 = vpack.c.b16 %v1472, %v1471
        %v1484 = vpack.c.b16 %v1474, %v1473
        %v1485 = vpack.c.b16 %v1476, %v1475
        %v1486 = vpack.c.b16 %v1478, %v1477
        %1495 = vmatprep.subr.bf16.mxu0 0
        %1496 = vmatpush1.bf16.msra.mxu0 %v1479
        %1497 = vmatprep.subr.bf16.mxu0 0
        %1498 = vmatpush1.bf16.msra.mxu0 %v1480
        %1499 = vmatprep.subr.bf16.mxu0 0
        %1500 = vmatpush1.bf16.msra.mxu0 %v1481
        %1501 = vmatprep.subr.bf16.mxu0 0
        %1502 = vmatpush1.bf16.msra.mxu0 %v1482
        %1503 = vmatprep.subr.bf16.mxu0 0
        %1504 = vmatpush1.bf16.msra.mxu0 %v1483
        %1505 = vmatprep.subr.bf16.mxu0 0
        %1506 = vmatpush1.bf16.msra.mxu0 %v1484
        %1507 = vmatprep.subr.bf16.mxu0 0
        %1508 = vmatpush1.bf16.msra.mxu0 %v1485
        %1509 = vmatprep.subr.bf16.mxu0 0
        %1510 = vmatpush1.bf16.msra.mxu0 %v1486
        %1511 = vmatprep.subr.bf16.mxu0 0
        %1512 = vmatpush1.bf16.msra.mxu0 0
        %1513 = vmatprep.subr.bf16.mxu0 0
        %1514 = vmatpush1.bf16.msra.mxu0 0
        %1515 = vmatprep.subr.bf16.mxu0 0
        %1516 = vmatpush1.bf16.msra.mxu0 0
        %1517 = vmatprep.subr.bf16.mxu0 0
        %1518 = vmatpush1.bf16.msra.mxu0 0
        %1519 = vmatprep.subr.bf16.mxu0 0
        %1520 = vmatpush1.bf16.msra.mxu0 0
        %1521 = vmatprep.subr.bf16.mxu0 0
        %1522 = vmatpush1.bf16.msra.mxu0 0
        %1523 = vmatprep.subr.bf16.mxu0 0
        %1524 = vmatpush1.bf16.msra.mxu0 0
        %1525 = vmatprep.subr.bf16.mxu0 0
        %1526 = vmatpush1.bf16.msra.mxu0 0
        %1527 = vmatprep.mubr.bf16.mxu0 0
        %1528 = vmatmul.mubr.bf16.gmra.mrb[0].mxu0 %v1423
        %v1529 = vpop.f32.mrb[0].mxu0
        %v1530 = vadd.f32 %v1445, %v1529
        %v1531 = vpop.f32.mrb[0].mxu0
        %v1532 = vpop.f32.mrb[0].mxu0
        %v1533 = vpop.f32.mrb[0].mxu0
        %1534 = vdwg.mxu0
        %v1535 = vmul.f32 %v1530, 1.442695
        %v1536 = vpow.pop %v1535
        %1537 = vadd.xlane.f32.xlu0 %v1536
        %v1538 = vpop.xlane.xlu0 %1537
        %v1539 = vrcp.pop %v1538
        %v1540 = vmul.f32 %v1536, %v1539
        %s1541 = sand.u32 %s40, 127
        %s1542 = ssub.s32 127, %s1541
        %v1543 = vlaneseq
        %v1544 = vand.u32 %v1543, 127
        %vm1545 = vcmp.lt.s32.totalorder %v1544, 12
        %v1546 = vsel %vm1545, %v824, 0.0
        %s1547 = smul.u32 %s1542, 8
        %s1548 = scalar_lea.vmem [#allocation18], %s1547
        %1549 = vst [vmem:[%s1548] sm:$0xff] %v1546
        %s1550 = ssub.s32 130, %s1541
        %s1551 = sand.u32 %s1550, 127
        %s1552 = smul.u32 %s1551, 8
        %s1553 = scalar_lea.vmem [#allocation18], %s1552
        %v1554 = vld [vmem:[%s1553] sm:$0xff]
        %1556 = vset.pattern.permute.xlu0 64
        %1557 = vperm.xlu0 %1556, %v1540
        %v1558 = vpop.permute.xlu0 %1557
        %v1560 = vmul.f32 %v1558, %v1554
        %s1561 = ssub.s32 134, %s1541
        %s1562 = sand.u32 %s1561, 127
        %s1563 = smul.u32 %s1562, 8
        %s1564 = scalar_lea.vmem [#allocation18], %s1563
        %v1565 = vld [vmem:[%s1564] sm:$0xff]
        %1566 = vset.pattern.permute.xlu0 65
        %1567 = vperm.xlu0 %1566, %v1540
        %v1568 = vpop.permute.xlu0 %1567
        %v1570 = vmul.f32 %v1568, %v1565
        %s1571 = ssub.s32 142, %s1541
        %s1572 = sand.u32 %s1571, 127
        %s1573 = smul.u32 %s1572, 8
        %s1574 = scalar_lea.vmem [#allocation18], %s1573
        %v1575 = vld [vmem:[%s1574] sm:$0xff]
        %1576 = vset.pattern.permute.xlu0 66
        %1577 = vperm.xlu0 %1576, %v1540
        %v1578 = vpop.permute.xlu0 %1577
        %v1580 = vmul.f32 %v1578, %v1575
        %s1581 = ssub.s32 158, %s1541
        %s1582 = sand.u32 %s1581, 127
        %s1583 = smul.u32 %s1582, 8
        %s1584 = scalar_lea.vmem [#allocation18], %s1583
        %v1585 = vld [vmem:[%s1584] sm:$0xff]
        %1586 = vset.pattern.permute.xlu0 67
        %1587 = vperm.xlu0 %1586, %v1540
        %v1588 = vpop.permute.xlu0 %1587
        %v1590 = vmul.f32 %v1588, %v1585
        %s1591 = ssub.s32 174, %s1541
        %s1592 = sand.u32 %s1591, 127
        %s1593 = smul.u32 %s1592, 8
        %s1594 = scalar_lea.vmem [#allocation18], %s1593
        %v1595 = vld [vmem:[%s1594] sm:$0xff]
        %1596 = vset.pattern.permute.xlu0 68
        %1597 = vperm.xlu0 %1596, %v1540
        %v1598 = vpop.permute.xlu0 %1597
        %v1600 = vmul.f32 %v1598, %v1595
        %s1601 = ssub.s32 190, %s1541
        %s1602 = sand.u32 %s1601, 127
        %s1603 = smul.u32 %s1602, 8
        %s1604 = scalar_lea.vmem [#allocation18], %s1603
        %v1605 = vld [vmem:[%s1604] sm:$0xff]
        %1606 = vset.pattern.permute.xlu0 69
        %1607 = vperm.xlu0 %1606, %v1540
        %v1608 = vpop.permute.xlu0 %1607
        %v1610 = vmul.f32 %v1608, %v1605
        %s1611 = ssub.s32 222, %s1541
        %s1612 = sand.u32 %s1611, 127
        %s1613 = smul.u32 %s1612, 8
        %s1614 = scalar_lea.vmem [#allocation18], %s1613
        %v1615 = vld [vmem:[%s1614] sm:$0xff]
        %1616 = vset.pattern.permute.xlu0 70
        %1617 = vperm.xlu0 %1616, %v1540
        %v1618 = vpop.permute.xlu0 %1617
        %v1620 = vmul.f32 %v1618, %v1615
        %s1621 = ssub.s32 254, %s1541
        %s1622 = sand.u32 %s1621, 127
        %s1623 = smul.u32 %s1622, 8
        %s1624 = scalar_lea.vmem [#allocation18], %s1623
        %v1625 = vld [vmem:[%s1624] sm:$0xff]
        %1626 = vset.pattern.permute.xlu0 71
        %1627 = vperm.xlu0 %1626, %v1540
        %v1628 = vpop.permute.xlu0 %1627
        %v1630 = vmul.f32 %v1628, %v1625
        %v1631 = vadd.f32 %v1560, %v1570
        %v1632 = vadd.f32 %v1580, %v1590
        %v1633 = vadd.f32 %v1631, %v1632
        %v1634 = vadd.f32 %v1600, %v1610
        %v1635 = vadd.f32 %v1620, %v1630
        %v1636 = vadd.f32 %v1634, %v1635
        %v1637 = vadd.f32 %v1633, %v1636
        %v1638 = vadd.f32 %v1637, %v1540
        %1639 = vst [vmem:[%s552] sm:$0xff] %v1638
        %s1640 = sand.u32 %s268, 1
        %s1641 = scalar_lea.sflag [#allocation4], %s1640
        %s1642 = sand.u32 %s268, 1
        %s1643 = smul.addr %s1642, 8
        %s1644 = scalar_lea.vmem [#allocation14], %s1643
        // Predicated region
        $region89: #{tpu_custom_call.1} parent=55 // pred_check
          %p1645 = pneg %p278
        $region90: #{tpu_custom_call.1} parent=55 // pred_check_branch
          %1647 = sbr.rel (%p1645) target = $region92
        $region91: #{tpu_custom_call.1} parent=55 // pred_region
          %s1649 = ssub.s32 128, 128
          %1650 = vsyncadd %s1641, %s1649
          %s1651 = sadd.s32 %s39, %s40
          %s1652 = smul.addr %s1651, 128
          %s1653 = scalar_lea.hbm %s9, %s1652
          %s1655 = sshll.u32 %s1644, 4
          %s1656 = int_to_ptr.vmem [resolvable:$true] %s1655
          %1658 = dma.vmem_to_hbm [thread:$0]  %s1656, 128, %s1653, %s1641
        $region92: #{tpu_custom_call.1} parent=55 // pred_fallthru
          _
        // Predicated region
        $region93: #{tpu_custom_call.1} parent=55 // pred_check
          %p1659 = pneg %p304
        $region94: #{tpu_custom_call.1} parent=55 // pred_check_branch
          %1661 = sbr.rel (%p1659) target = $region96
        $region95: #{tpu_custom_call.1} parent=55 // pred_region
          %s1663 = ssub.s32 128, 128
          %1664 = vsyncadd [#allocation16], %s1663
          %s1665 = smul.addr %s39, 128
          %s1666 = scalar_lea.hbm %s10, %s1665
          %s1668 = sshll.u32 [#allocation15], 4
          %s1669 = int_to_ptr.vmem [resolvable:$true] %s1668
          %1671 = dma.vmem_to_hbm [thread:$0]  %s1669, 128, %s1666, [#allocation16]
        $region96: #{tpu_custom_call.1} parent=55 // pred_fallthru
          _
        // Predicated region
        $region97: #{tpu_custom_call.1} parent=55 // pred_check
          %p1672 = pneg %p330
        $region98: #{tpu_custom_call.1} parent=55 // pred_check_branch
          %1674 = sbr.rel (%p1672) target = $region100
        $region99: #{tpu_custom_call.1} parent=55 // pred_region
          %s1676 = ssub.s32 128, 128
          %1677 = vsyncadd [#allocation16], %s1676
          %s1678 = smul.addr %s39, 128
          %s1679 = scalar_lea.hbm %s11, %s1678
          %s1681 = sshll.u32 [#allocation17], 4
          %s1682 = int_to_ptr.vmem [resolvable:$true] %s1681
          %1684 = dma.vmem_to_hbm [thread:$0]  %s1682, 128, %s1679, [#allocation16]
        $region100: #{tpu_custom_call.1} parent=55 // pred_fallthru
          _
        // Predicated region
        $region101: #{tpu_custom_call.1} parent=55 // pred_check
          %p1685 = pneg %p356
        $region102: #{tpu_custom_call.1} parent=55 // pred_check_branch
          %1687 = sbr.rel (%p1685) target = $region104
        $region103: #{tpu_custom_call.1} parent=55 // pred_region
          %s1689 = ssub.s32 16384, 16384
          %1690 = vsyncadd [#allocation19], %s1689
          %s1691 = smul.addr %s39, 128
          %s1692 = scalar_lea.hbm %s12, %s1691
          %s1693 = sshll.u32 [#allocation18], 4
          %s1694 = int_to_ptr.vmem [resolvable:$true] %s1693
          %1699 = dma.vmem_to_hbm [thread:$0]  %s1694, 16384, %s1692, [#allocation19], 128, 128, 8
        $region104: #{tpu_custom_call.1} parent=55 // pred_fallthru
          _
        // Predicated region
        $region105: #{tpu_custom_call.1} parent=55 // pred_check
          %p1700 = pneg %p304
        $region106: #{tpu_custom_call.1} parent=55 // pred_check_branch
          %1702 = sbr.rel (%p1700) target = $region108
        $region107: #{tpu_custom_call.1} parent=55 // pred_region
          %1703 = dma.done [#allocation16], 128
        $region108: #{tpu_custom_call.1} parent=55 // pred_fallthru
          _
        // Predicated region
        $region109: #{tpu_custom_call.1} parent=55 // pred_check
          %p1704 = pneg %p330
        $region110: #{tpu_custom_call.1} parent=55 // pred_check_branch
          %1706 = sbr.rel (%p1704) target = $region112
        $region111: #{tpu_custom_call.1} parent=55 // pred_region
          %1707 = dma.done [#allocation16], 128
        $region112: #{tpu_custom_call.1} parent=55 // pred_fallthru
          _
        // Predicated region
        $region113: #{tpu_custom_call.1} parent=55 // pred_check
          %p1708 = pneg %p356
        $region114: #{tpu_custom_call.1} parent=55 // pred_check_branch
          %1710 = sbr.rel (%p1708) target = $region116
        $region115: #{tpu_custom_call.1} parent=55 // pred_region
          %1711 = dma.done [#allocation19], 16384
        $region116: #{tpu_custom_call.1} parent=55 // pred_fallthru
          _
      $region56: #{tpu_custom_call.1} parent=5 // pred_fallthru
        _
      %p1712 = scmp.le.s32.totalorder 2, %s30
      // Predicated region
      $region117: #{tpu_custom_call.1} parent=5 // pred_check
        %p1713 = pneg %p1712
      $region118: #{tpu_custom_call.1} parent=5 // pred_check_branch
        %1715 = sbr.rel (%p1713) target = $region120
      $region119: #{tpu_custom_call.1} parent=5 // pred_region
        %s1716 = ssub.s32 %s30, 2
        // Predicated region
        $region121: #{tpu_custom_call.1} parent=119 // pred_check
          %p1717 = pneg %p284
        $region122: #{tpu_custom_call.1} parent=119 // pred_check_branch
          %1719 = sbr.rel (%p1717) target = $region124
        $region123: #{tpu_custom_call.1} parent=119 // pred_region
          %s1720 = sand.u32 %s269, 1
          %s1721 = scalar_lea.sflag [#allocation4], %s1720
          %s1722 = sand.u32 %s269, 1
          %s1723 = smul.addr %s1722, 8
          %s1724 = scalar_lea.vmem [#allocation14], %s1723
          %1725 = dma.done %s1721, 128
        $region124: #{tpu_custom_call.1} parent=119 // pred_fallthru
          _
      $region120: #{tpu_custom_call.1} parent=5 // pred_fallthru
        _
    $region6: #{tpu_custom_call.1} parent=1 // loop_footer
      %s34 = sadd.s32 1, %s30
    $region7: #{tpu_custom_call.1} parent=1 // loop_footer_branch
      %29 = sbr.rel target = $region3
    $region8: #{tpu_custom_call.1} parent=1 // loop_exit
      _
    %1726 = vsyncpa [#allocation3], 1
    %s1727 = scalar_lea.sflag [#allocation3], 1
    %1728 = vsyncpa %s1727, 1
    %1729 = vsyncpa [#allocation6], 1
    %1730 = vsyncpa [#allocation9], 1
    %1731 = vsyncpa [#allocation12], 1
    %1732 = vsyncpa [#allocation4], 1
    %s1733 = scalar_lea.sflag [#allocation4], 1
    %1734 = vsyncpa %s1733, 1
    %1735 = vsyncpa [#allocation16], 1
    %1736 = vsyncpa [#allocation19], 1

</llo_original>
